<compile_context>
chip_gen: v5e
topology: v5e:2x2
jax: 0.10.0
libtpu: 0.0.40
codegen_flags: <defaults>
</compile_context>

<pallas_src>
import functools

import jax
import jax.numpy as jnp
from jax.experimental import pallas as pl
from jax.experimental.pallas import tpu as pltpu

_VMEM_LIMIT_BYTES = 48 * 1024 * 1024


def _vmem_spec():
    return pl.BlockSpec(memory_space=pltpu.MemorySpace.VMEM)


# ---------------------------------------------------------------------------
# In-kernel helpers / kernels
# ---------------------------------------------------------------------------
def _conv_taps(lhs_ref, w_ref, *, wp2, rows):
    """k=4, s=2, p=1 conv as 4 window matmuls over phase-packed rows.

    lhs_ref : (rows + extra, 4*Cin) bf16, one row per position r = oh*wp2 + ow on
              the (Ho+1, Wo+1) output grid; columns hold the 2x2 input parities.
    w_ref   : (4, 4*Cin, Cout) bf16, window-grouped weights.
    Window (di, dj) contributes dot(lhs[r + di*wp2 + dj], W_win) to output row r,
    realised as a statically offset VMEM row slice (no im2col, no rotate).
    Returns the f32 accumulator of shape (rows, Cout).
    """
    acc = None
    for win in range(4):
        shift = (win // 2) * wp2 + (win % 2)
        lhs = lhs_ref[pl.ds(shift, rows), :]
        p = jnp.dot(lhs, w_ref[win], preferred_element_type=jnp.float32)
        acc = p if acc is None else acc + p
    return acc


def _conv_lrelu_kernel(lhs_ref, w_ref, b_ref, o_ref, *, wp2, rows, slope):
    """Fused conv + bias + LeakyReLU for one image (grid over batch)."""
    acc = _conv_taps(lhs_ref, w_ref, wp2=wp2, rows=rows) + b_ref[...]
    o_ref[...] = jnp.where(acc > 0, acc, slope * acc).astype(o_ref.dtype)


def _conv_bn_lrelu_kernel(lhs_ref, w_ref, g_ref, be_ref, m_ref, o_ref, *,
                          wp2, rows, slope, eps, inv_count):
    """Fused conv + BatchNorm2d (training-mode batch stats) + LeakyReLU."""
    acc = _conv_taps(lhs_ref, w_ref, wp2=wp2, rows=rows)     # (rows, Cout) f32
    mask = m_ref[...]                                        # (1, rows) of {0,1}
    # Single pass over the accumulator: sum and sum-of-squares of valid rows,
    # both pushed onto the MXU via the mask-vector dot (compile-time-constant
    # mask, so the DMA is tiny and the VPU only pays for acc*acc).
    ssum = jnp.dot(mask, acc, preferred_element_type=jnp.float32)        # (1, C)
    ssq = jnp.dot(mask, acc * acc, preferred_element_type=jnp.float32)   # (1, C)
    mean = ssum * inv_count
    var = ssq * inv_count - mean * mean          # biased variance (torch BN)
    y = (acc - mean) * jax.lax.rsqrt(var + eps)
    y = y * g_ref[...] + be_ref[...]
    o_ref[...] = jnp.where(y > 0, y, slope * y).astype(o_ref.dtype)


def _head_kernel(x_ref, w_ref, b_ref, o_ref, *, num_classes):
    """Merged d-head + code-head: one lane-dense matmul, masked softmax."""
    acc = jnp.dot(x_ref[...], w_ref[...], preferred_element_type=jnp.float32)
    acc = acc + b_ref[...]
    col = jax.lax.broadcasted_iota(jnp.int32, acc.shape, 1)
    is_code = jnp.logical_and(col >= 1, col < 1 + num_classes)
    m = jnp.max(jnp.where(is_code, acc, jnp.float32(-1e30)), axis=-1,
                keepdims=True)
    e = jnp.where(is_code, jnp.exp(acc - m), 0.0)
    denom = jnp.sum(e, axis=-1, keepdims=True)
    r = pl.reciprocal(denom, approx=True)        # EUP slot
    r = r * (2.0 - denom * r)                    # one Newton step -> f32 accuracy
    o_ref[...] = jnp.where(col == 0, acc, e * r).astype(o_ref.dtype)


# ---------------------------------------------------------------------------
# Host-side layout plumbing (same byte count as the input; no 16x im2col blow-up)
# ---------------------------------------------------------------------------
def _phase_pack(x_nhwc, dtype=jnp.bfloat16):
    """NHWC -> (N, R_pad, 4*C) stride-2 phase packing of the zero-padded input."""
    N, H, W, C = x_nhwc.shape
    assert H % 2 == 0 and W % 2 == 0
    xp = jnp.pad(x_nhwc, ((0, 0), (1, 1), (1, 1), (0, 0)))
    Hp2, Wp2 = (H + 2) // 2, (W + 2) // 2
    xp = xp.reshape(N, Hp2, 2, Wp2, 2, C)
    xp = jnp.transpose(xp, (0, 1, 3, 2, 4, 5))       # (N, h2, w2, rp, cp, C)
    R = Hp2 * Wp2
    R_pad = -(-R // 8) * 8                           # sublane-align output rows
    lhs = xp.reshape(N, R, 4 * C)
    if R_pad != R:
        lhs = jnp.pad(lhs, ((0, 0), (0, R_pad - R), (0, 0)))
    return lhs.astype(dtype), (Hp2, Wp2, R, R_pad)


def _pack_weights(w, dtype=jnp.bfloat16):
    """PyTorch conv weight (Cout, Cin, 4, 4) -> (4, 4*Cin, Cout), window-major."""
    cout, cin = w.shape[0], w.shape[1]
    w = w.reshape(cout, cin, 2, 2, 2, 2)             # (co, ci, di, rp, dj, cp)
    w = jnp.transpose(w, (2, 4, 3, 5, 1, 0))         # (di, dj, rp, cp, ci, co)
    return w.reshape(4, 4 * cin, cout).astype(dtype)


def _unpack(out, N, Hp2, Wp2, R, R_pad, cout):
    """Flat padded-grid output -> NHWC (N, Ho, Wo, Cout)."""
    out = out.reshape(N, R_pad, cout)[:, :R, :].reshape(N, Hp2, Wp2, cout)
    return out[:, :Hp2 - 1, :Wp2 - 1, :]


# ---------------------------------------------------------------------------
# Layer wrappers
# ---------------------------------------------------------------------------
def conv_lrelu(x_nhwc, w, b, *, slope=0.2):
    """Conv2d(k=4,s=2,p=1) + bias + LeakyReLU, gridded over the batch."""
    N = x_nhwc.shape[0]
    cout = w.shape[0]
    lhs, (Hp2, Wp2, R, R_pad) = _phase_pack(x_nhwc)
    k4 = lhs.shape[-1]
    extra = -(-(Wp2 + 1) // 8) * 8                   # room for the window shifts
    lhs = jnp.pad(lhs, ((0, 0), (0, extra), (0, 0)))
    w_p = _pack_weights(w)
    bias = b.reshape(1, cout).astype(jnp.float32)

    kernel = functools.partial(_conv_lrelu_kernel, wp2=Wp2, rows=R_pad,
                               slope=slope)
    out = pl.pallas_call(
        kernel,
        grid=(N,),
        in_specs=[
            pl.BlockSpec((None, R_pad + extra, k4), lambda n: (n, 0, 0)),
            pl.BlockSpec((4, k4, cout), lambda n: (0, 0, 0)),
            pl.BlockSpec((1, cout), lambda n: (0, 0)),
        ],
        out_specs=pl.BlockSpec((None, R_pad, cout), lambda n: (n, 0, 0)),
        out_shape=jax.ShapeDtypeStruct((N, R_pad, cout), jnp.bfloat16),
        compiler_params=pltpu.CompilerParams(
            dimension_semantics=("parallel",),
            vmem_limit_bytes=_VMEM_LIMIT_BYTES),
    )(lhs, w_p, bias)
    return _unpack(out, N, Hp2, Wp2, R, R_pad, cout)


def conv_bn_lrelu(x_nhwc, w, gamma, beta, *, slope=0.2, eps=1e-5):
    """Conv2d(k=4,s=2,p=1, bias=False) + BatchNorm2d(train) + LeakyReLU, fused."""
    N = x_nhwc.shape[0]
    cout = w.shape[0]
    lhs, (Hp2, Wp2, R, R_pad) = _phase_pack(x_nhwc)
    Ho, Wo = Hp2 - 1, Wp2 - 1
    k4 = lhs.shape[-1]
    rows = N * R_pad
    extra = -(-(Wp2 + 1) // 8) * 8
    lhs = jnp.pad(lhs.reshape(rows, k4), ((0, extra), (0, 0)))
    w_p = _pack_weights(w)

    # 0/1 mask of rows that correspond to real output positions; BN statistics
    # must ignore the padded / out-of-window rows.  Shape-only -> the constant
    # is folded at compile time.
    r_ids = jnp.arange(R_pad)
    m = jnp.logical_and(r_ids // Wp2 < Ho, r_ids % Wp2 < Wo)
    mask = jnp.tile(m.astype(jnp.float32), (N,)).reshape(1, rows)

    kernel = functools.partial(
        _conv_bn_lrelu_kernel, wp2=Wp2, rows=rows, slope=slope, eps=eps,
        inv_count=1.0 / float(N * Ho * Wo))
    out = pl.pallas_call(
        kernel,
        in_specs=[_vmem_spec() for _ in range(5)],
        out_specs=_vmem_spec(),
        out_shape=jax.ShapeDtypeStruct((rows, cout), jnp.bfloat16),
        compiler_params=pltpu.CompilerParams(vmem_limit_bytes=_VMEM_LIMIT_BYTES),
    )(lhs, w_p, gamma.reshape(1, cout).astype(jnp.float32),
      beta.reshape(1, cout).astype(jnp.float32), mask)
    # TODO(synk): for very large N*Ho*Wo, switch to a row-tiled two-pass BN
    # (stats pass + normalize pass) instead of a single whole-batch block.
    return _unpack(out, N, Hp2, Wp2, R, R_pad, cout)


def heads(flat, wd, bd, wc, bc, *, num_classes):
    """Both Linear heads as one lane-dense (padded-to-128) matmul + softmax."""
    nb, _ = flat.shape
    n_real = 1 + num_classes
    n_pad = -(-n_real // 128) * 128
    w = jnp.concatenate([wd, wc], axis=0).T                      # (F, 1+nc)
    w = jnp.pad(w, ((0, 0), (0, n_pad - n_real))).astype(jnp.bfloat16)
    b = jnp.pad(jnp.concatenate([bd, bc], axis=0), (0, n_pad - n_real))
    b = b.reshape(1, n_pad).astype(jnp.float32)

    kernel = functools.partial(_head_kernel, num_classes=num_classes)
    out = pl.pallas_call(
        kernel,
        in_specs=[_vmem_spec() for _ in range(3)],
        out_specs=_vmem_spec(),
        out_shape=jax.ShapeDtypeStruct((nb, n_pad), jnp.float32),
        compiler_params=pltpu.CompilerParams(vmem_limit_bytes=_VMEM_LIMIT_BYTES),
    )(flat.astype(jnp.bfloat16), w, b)
    return out[:, :1], out[:, 1:1 + num_classes]


# ---------------------------------------------------------------------------
# Full Discriminator forward
# ---------------------------------------------------------------------------
def discriminator_forward(x_nchw, params):
    x = jnp.transpose(x_nchw, (0, 2, 3, 1))            # NCHW -> NHWC
    x = conv_lrelu(x, params["w1"], params["b1"])
    x = conv_bn_lrelu(x, params["w2"], params["g2"], params["be2"])
    x = conv_bn_lrelu(x, params["w3"], params["g3"], params["be3"])
    x = conv_bn_lrelu(x, params["w4"], params["g4"], params["be4"])
    # nn.Flatten() flattens in NCHW (channel-major) order.  When the final
    # spatial size is 1x1 the transpose is a no-op, so skip the XLA copy.
    n, ho, wo, c = x.shape
    if ho == 1 and wo == 1:
        flat = x.reshape(n, c)
    else:
        flat = jnp.transpose(x, (0, 3, 1, 2)).reshape(n, c * ho * wo)
    return heads(flat, params["wd"], params["bd"], params["wc"], params["bc"],
                 num_classes=params["wc"].shape[0])


def init_params(key, output_channels, dim, input_image_size, num_classes):
    shape = dim * 8 * (input_image_size // 2 ** 4) ** 2
    ks = jax.random.split(key, 8)
    return {
        "w1": 0.05 * jax.random.normal(ks[0], (dim, output_channels, 4, 4), jnp.float32),
        "b1": jnp.zeros((dim,), jnp.float32),
        "w2": 0.05 * jax.random.normal(ks[1], (dim * 2, dim, 4, 4), jnp.float32),
        "g2": jnp.ones((dim * 2,), jnp.float32),
        "be2": jnp.zeros((dim * 2,), jnp.float32),
        "w3": 0.05 * jax.random.normal(ks[2], (dim * 4, dim * 2, 4, 4), jnp.float32),
        "g3": jnp.ones((dim * 4,), jnp.float32),
        "be3": jnp.zeros((dim * 4,), jnp.float32),
        "w4": 0.05 * jax.random.normal(ks[3], (dim * 8, dim * 4, 4, 4), jnp.float32),
        "g4": jnp.ones((dim * 8,), jnp.float32),
        "be4": jnp.zeros((dim * 8,), jnp.float32),
        "wd": 0.05 * jax.random.normal(ks[4], (1, shape), jnp.float32),
        "bd": jnp.zeros((1,), jnp.float32),
        "wc": 0.05 * jax.random.normal(ks[5], (num_classes, shape), jnp.float32),
        "bc": jnp.zeros((num_classes,), jnp.float32),
    }


if __name__ == "__main__":
    input_image_size = 16
    output_channels = 4
    dim = 8
    num_classes = 10
    batch = 2

    key = jax.random.PRNGKey(0)
    kx, kp = jax.random.split(key)
    x = jax.random.normal(
        kx, (batch, output_channels, input_image_size, input_image_size),
        jnp.float32)
    params = init_params(kp, output_channels, dim, input_image_size, num_classes)

    fwd = jax.jit(discriminator_forward)
    d_out, code_out = fwd(x, params)
    d_out = jax.block_until_ready(d_out)
    code_out = jax.block_until_ready(code_out)

    assert d_out.shape == (batch, 1)
    assert code_out.shape == (batch, num_classes)
    assert bool(jnp.all(jnp.isfinite(d_out)))
    assert bool(jnp.all(jnp.isfinite(code_out)))
    assert bool(jnp.allclose(jnp.sum(code_out, axis=-1), 1.0, atol=1e-4))
    print("KERNEL_OK")
</pallas_src>

<mosaic_0001>
module attributes {stable_mosaic.version = 11 : i64} {
  func.func @_conv_lrelu_kernel(%arg0: i32, %arg1: memref<1x104x16xbf16, #tpu.memory_space<vmem>>, %arg2: memref<4x16x8xbf16, #tpu.memory_space<vmem>>, %arg3: memref<1x8xf32, #tpu.memory_space<vmem>>, %arg4: memref<1x88x8xbf16, #tpu.memory_space<vmem>>) attributes {dimension_semantics = [#tpu.dimension_semantics<parallel>], iteration_bounds = array<i64: 2>, scalar_prefetch = 0 : i64, scratch_operands = 0 : i64, tpu.core_type = #tpu.core_type<tc>, window_params = [{transform_indices = @transform_0, window_bounds = array<i64: 1, 104, 16>}, {pipeline_mode = #tpu.pipeline_mode<synchronous>, transform_indices = @transform_1, window_bounds = array<i64: 4, 16, 8>}, {pipeline_mode = #tpu.pipeline_mode<synchronous>, transform_indices = @transform_2, window_bounds = array<i64: 1, 8>}, {transform_indices = @transform_3, window_bounds = array<i64: 1, 88, 8>}]} {
    %c0 = arith.constant 0 : index
    %c0_0 = arith.constant 0 : index
    %c0_1 = arith.constant 0 : index
    %0 = vector.load %arg1[%c0, %c0_0, %c0_1] : memref<1x104x16xbf16, #tpu.memory_space<vmem>>, vector<1x88x16xbf16>
    %1 = vector.shape_cast %0 : vector<1x88x16xbf16> to vector<88x16xbf16>
    %c0_2 = arith.constant 0 : index
    %c0_3 = arith.constant 0 : index
    %c0_4 = arith.constant 0 : index
    %2 = vector.load %arg2[%c0_2, %c0_3, %c0_4] : memref<4x16x8xbf16, #tpu.memory_space<vmem>>, vector<1x16x8xbf16>
    %3 = vector.shape_cast %2 : vector<1x16x8xbf16> to vector<16x8xbf16>
    %cst = arith.constant dense<0.000000e+00> : vector<88x8xf32>
    %4 = tpu.matmul %1, %3, %cst {dimension_numbers = #tpu.dot_dimension_numbers<[1], [0], [0], [1], [0, 0, 1, 1], [], []>} : vector<88x16xbf16>, vector<16x8xbf16>, vector<88x8xf32> -> vector<88x8xf32>
    %c0_5 = arith.constant 0 : index
    %c1 = arith.constant 1 : index
    %c0_6 = arith.constant 0 : index
    %5 = vector.load %arg1[%c0_5, %c1, %c0_6] : memref<1x104x16xbf16, #tpu.memory_space<vmem>>, vector<1x88x16xbf16>
    %6 = vector.shape_cast %5 : vector<1x88x16xbf16> to vector<88x16xbf16>
    %c1_7 = arith.constant 1 : index
    %c0_8 = arith.constant 0 : index
    %c0_9 = arith.constant 0 : index
    %7 = vector.load %arg2[%c1_7, %c0_8, %c0_9] : memref<4x16x8xbf16, #tpu.memory_space<vmem>>, vector<1x16x8xbf16>
    %8 = vector.shape_cast %7 : vector<1x16x8xbf16> to vector<16x8xbf16>
    %cst_10 = arith.constant dense<0.000000e+00> : vector<88x8xf32>
    %9 = tpu.matmul %6, %8, %cst_10 {dimension_numbers = #tpu.dot_dimension_numbers<[1], [0], [0], [1], [0, 0, 1, 1], [], []>} : vector<88x16xbf16>, vector<16x8xbf16>, vector<88x8xf32> -> vector<88x8xf32>
    %10 = arith.addf %4, %9 : vector<88x8xf32>
    %c0_11 = arith.constant 0 : index
    %c9 = arith.constant 9 : index
    %c0_12 = arith.constant 0 : index
    %11 = vector.load %arg1[%c0_11, %c9, %c0_12] : memref<1x104x16xbf16, #tpu.memory_space<vmem>>, vector<1x88x16xbf16>
    %12 = vector.shape_cast %11 : vector<1x88x16xbf16> to vector<88x16xbf16>
    %c2 = arith.constant 2 : index
    %c0_13 = arith.constant 0 : index
    %c0_14 = arith.constant 0 : index
    %13 = vector.load %arg2[%c2, %c0_13, %c0_14] : memref<4x16x8xbf16, #tpu.memory_space<vmem>>, vector<1x16x8xbf16>
    %14 = vector.shape_cast %13 : vector<1x16x8xbf16> to vector<16x8xbf16>
    %cst_15 = arith.constant dense<0.000000e+00> : vector<88x8xf32>
    %15 = tpu.matmul %12, %14, %cst_15 {dimension_numbers = #tpu.dot_dimension_numbers<[1], [0], [0], [1], [0, 0, 1, 1], [], []>} : vector<88x16xbf16>, vector<16x8xbf16>, vector<88x8xf32> -> vector<88x8xf32>
    %16 = arith.addf %10, %15 : vector<88x8xf32>
    %c0_16 = arith.constant 0 : index
    %c10 = arith.constant 10 : index
    %c0_17 = arith.constant 0 : index
    %17 = vector.load %arg1[%c0_16, %c10, %c0_17] : memref<1x104x16xbf16, #tpu.memory_space<vmem>>, vector<1x88x16xbf16>
    %18 = vector.shape_cast %17 : vector<1x88x16xbf16> to vector<88x16xbf16>
    %c3 = arith.constant 3 : index
    %c0_18 = arith.constant 0 : index
    %c0_19 = arith.constant 0 : index
    %19 = vector.load %arg2[%c3, %c0_18, %c0_19] : memref<4x16x8xbf16, #tpu.memory_space<vmem>>, vector<1x16x8xbf16>
    %20 = vector.shape_cast %19 : vector<1x16x8xbf16> to vector<16x8xbf16>
    %cst_20 = arith.constant dense<0.000000e+00> : vector<88x8xf32>
    %21 = tpu.matmul %18, %20, %cst_20 {dimension_numbers = #tpu.dot_dimension_numbers<[1], [0], [0], [1], [0, 0, 1, 1], [], []>} : vector<88x16xbf16>, vector<16x8xbf16>, vector<88x8xf32> -> vector<88x8xf32>
    %22 = arith.addf %16, %21 : vector<88x8xf32>
    %c0_21 = arith.constant 0 : index
    %c0_22 = arith.constant 0 : index
    %23 = vector.load %arg3[%c0_21, %c0_22] : memref<1x8xf32, #tpu.memory_space<vmem>>, vector<1x8xf32>
    %24 = vector.broadcast %23 : vector<1x8xf32> to vector<88x8xf32>
    %25 = arith.addf %22, %24 : vector<88x8xf32>
    %cst_23 = arith.constant 0.000000e+00 : f32
    %26 = vector.broadcast %cst_23 : f32 to vector<88x8xf32>
    %27 = arith.cmpf ogt, %25, %26 : vector<88x8xf32>
    %cst_24 = arith.constant 2.000000e-01 : f32
    %28 = vector.broadcast %cst_24 : f32 to vector<88x8xf32>
    %29 = arith.mulf %28, %25 : vector<88x8xf32>
    %30 = arith.select %27, %25, %29 : vector<88x8xi1>, vector<88x8xf32>
    %31 = arith.truncf %30 : vector<88x8xf32> to vector<88x8xbf16>
    %c0_25 = arith.constant 0 : index
    %c0_26 = arith.constant 0 : index
    %c0_27 = arith.constant 0 : index
    %32 = vector.load %arg4[%c0_25, %c0_26, %c0_27] : memref<1x88x8xbf16, #tpu.memory_space<vmem>>, vector<1x88x8xbf16>
    %33 = vector.shape_cast %32 : vector<1x88x8xbf16> to vector<88x8xbf16>
    %34 = vector.shape_cast %31 : vector<88x8xbf16> to vector<1x88x8xbf16>
    tpu.vector_store %arg4[%c0_25, %c0_26, %c0_27], %34 {strides = array<i32>} : memref<1x88x8xbf16, #tpu.memory_space<vmem>>, vector<1x88x8xbf16>,
    return
  }
  func.func @transform_0(%arg0: i32) -> (i32, i32, i32) {
    %c0_i32 = arith.constant 0 : i32
    %c0_i32_0 = arith.constant 0 : i32
    %c0_i32_1 = arith.constant 0 : i32
    return %arg0, %c0_i32, %c0_i32_0 : i32, i32, i32
  }
  func.func @transform_1(%arg0: i32) -> (i32, i32, i32) {
    %c0_i32 = arith.constant 0 : i32
    %c0_i32_0 = arith.constant 0 : i32
    %c0_i32_1 = arith.constant 0 : i32
    %c0_i32_2 = arith.constant 0 : i32
    return %c0_i32, %c0_i32_0, %c0_i32_1 : i32, i32, i32
  }
  func.func @transform_2(%arg0: i32) -> (i32, i32) {
    %c0_i32 = arith.constant 0 : i32
    %c0_i32_0 = arith.constant 0 : i32
    %c0_i32_1 = arith.constant 0 : i32
    return %c0_i32, %c0_i32_0 : i32, i32
  }
  func.func @transform_3(%arg0: i32) -> (i32, i32, i32) {
    %c0_i32 = arith.constant 0 : i32
    %c0_i32_0 = arith.constant 0 : i32
    %c0_i32_1 = arith.constant 0 : i32
    return %arg0, %c0_i32, %c0_i32_0 : i32, i32, i32
  }
}

module attributes {stable_mosaic.version = 11 : i64} {
  func.func @_conv_bn_lrelu_kernel(%arg0: memref<72x32xbf16, #tpu.memory_space<vmem>>, %arg1: memref<4x32x16xbf16, #tpu.memory_space<vmem>>, %arg2: memref<1x16xf32, #tpu.memory_space<vmem>>, %arg3: memref<1x16xf32, #tpu.memory_space<vmem>>, %arg4: memref<1x64xf32, #tpu.memory_space<vmem>>, %arg5: memref<64x16xbf16, #tpu.memory_space<vmem>>) attributes {dimension_semantics = [], scalar_prefetch = 0 : i64, scratch_operands = 0 : i64, tpu.core_type = #tpu.core_type<tc>} {
    %c0 = arith.constant 0 : index
    %c0_0 = arith.constant 0 : index
    %0 = vector.load %arg0[%c0, %c0_0] : memref<72x32xbf16, #tpu.memory_space<vmem>>, vector<64x32xbf16>
    %c0_1 = arith.constant 0 : index
    %c0_2 = arith.constant 0 : index
    %c0_3 = arith.constant 0 : index
    %1 = vector.load %arg1[%c0_1, %c0_2, %c0_3] : memref<4x32x16xbf16, #tpu.memory_space<vmem>>, vector<1x32x16xbf16>
    %2 = vector.shape_cast %1 : vector<1x32x16xbf16> to vector<32x16xbf16>
    %cst = arith.constant dense<0.000000e+00> : vector<64x16xf32>
    %3 = tpu.matmul %0, %2, %cst {dimension_numbers = #tpu.dot_dimension_numbers<[1], [0], [0], [1], [0, 0, 1, 1], [], []>} : vector<64x32xbf16>, vector<32x16xbf16>, vector<64x16xf32> -> vector<64x16xf32>
    %c1 = arith.constant 1 : index
    %c0_4 = arith.constant 0 : index
    %4 = vector.load %arg0[%c1, %c0_4] : memref<72x32xbf16, #tpu.memory_space<vmem>>, vector<64x32xbf16>
    %c1_5 = arith.constant 1 : index
    %c0_6 = arith.constant 0 : index
    %c0_7 = arith.constant 0 : index
    %5 = vector.load %arg1[%c1_5, %c0_6, %c0_7] : memref<4x32x16xbf16, #tpu.memory_space<vmem>>, vector<1x32x16xbf16>
    %6 = vector.shape_cast %5 : vector<1x32x16xbf16> to vector<32x16xbf16>
    %cst_8 = arith.constant dense<0.000000e+00> : vector<64x16xf32>
    %7 = tpu.matmul %4, %6, %cst_8 {dimension_numbers = #tpu.dot_dimension_numbers<[1], [0], [0], [1], [0, 0, 1, 1], [], []>} : vector<64x32xbf16>, vector<32x16xbf16>, vector<64x16xf32> -> vector<64x16xf32>
    %8 = arith.addf %3, %7 : vector<64x16xf32>
    %c5 = arith.constant 5 : index
    %c0_9 = arith.constant 0 : index
    %9 = vector.load %arg0[%c5, %c0_9] : memref<72x32xbf16, #tpu.memory_space<vmem>>, vector<64x32xbf16>
    %c2 = arith.constant 2 : index
    %c0_10 = arith.constant 0 : index
    %c0_11 = arith.constant 0 : index
    %10 = vector.load %arg1[%c2, %c0_10, %c0_11] : memref<4x32x16xbf16, #tpu.memory_space<vmem>>, vector<1x32x16xbf16>
    %11 = vector.shape_cast %10 : vector<1x32x16xbf16> to vector<32x16xbf16>
    %cst_12 = arith.constant dense<0.000000e+00> : vector<64x16xf32>
    %12 = tpu.matmul %9, %11, %cst_12 {dimension_numbers = #tpu.dot_dimension_numbers<[1], [0], [0], [1], [0, 0, 1, 1], [], []>} : vector<64x32xbf16>, vector<32x16xbf16>, vector<64x16xf32> -> vector<64x16xf32>
    %13 = arith.addf %8, %12 : vector<64x16xf32>
    %c6 = arith.constant 6 : index
    %c0_13 = arith.constant 0 : index
    %14 = vector.load %arg0[%c6, %c0_13] : memref<72x32xbf16, #tpu.memory_space<vmem>>, vector<64x32xbf16>
    %c3 = arith.constant 3 : index
    %c0_14 = arith.constant 0 : index
    %c0_15 = arith.constant 0 : index
    %15 = vector.load %arg1[%c3, %c0_14, %c0_15] : memref<4x32x16xbf16, #tpu.memory_space<vmem>>, vector<1x32x16xbf16>
    %16 = vector.shape_cast %15 : vector<1x32x16xbf16> to vector<32x16xbf16>
    %cst_16 = arith.constant dense<0.000000e+00> : vector<64x16xf32>
    %17 = tpu.matmul %14, %16, %cst_16 {dimension_numbers = #tpu.dot_dimension_numbers<[1], [0], [0], [1], [0, 0, 1, 1], [], []>} : vector<64x32xbf16>, vector<32x16xbf16>, vector<64x16xf32> -> vector<64x16xf32>
    %18 = arith.addf %13, %17 : vector<64x16xf32>
    %c0_17 = arith.constant 0 : index
    %c0_18 = arith.constant 0 : index
    %19 = vector.load %arg4[%c0_17, %c0_18] : memref<1x64xf32, #tpu.memory_space<vmem>>, vector<1x64xf32>
    %cst_19 = arith.constant dense<0.000000e+00> : vector<1x16xf32>
    %20 = tpu.matmul %19, %18, %cst_19 {dimension_numbers = #tpu.dot_dimension_numbers<[1], [0], [0], [1], [0, 0, 1, 1], [], []>} : vector<1x64xf32>, vector<64x16xf32>, vector<1x16xf32> -> vector<1x16xf32>
    %21 = arith.mulf %18, %18 : vector<64x16xf32>
    %cst_20 = arith.constant dense<0.000000e+00> : vector<1x16xf32>
    %22 = tpu.matmul %19, %21, %cst_20 {dimension_numbers = #tpu.dot_dimension_numbers<[1], [0], [0], [1], [0, 0, 1, 1], [], []>} : vector<1x64xf32>, vector<64x16xf32>, vector<1x16xf32> -> vector<1x16xf32>
    %cst_21 = arith.constant 3.125000e-02 : f32
    %23 = vector.broadcast %cst_21 : f32 to vector<1x16xf32>
    %24 = arith.mulf %20, %23 : vector<1x16xf32>
    %cst_22 = arith.constant 3.125000e-02 : f32
    %25 = vector.broadcast %cst_22 : f32 to vector<1x16xf32>
    %26 = arith.mulf %22, %25 : vector<1x16xf32>
    %27 = arith.mulf %24, %24 : vector<1x16xf32>
    %28 = arith.subf %26, %27 : vector<1x16xf32>
    %29 = vector.broadcast %24 : vector<1x16xf32> to vector<64x16xf32>
    %30 = arith.subf %18, %29 : vector<64x16xf32>
    %cst_23 = arith.constant 9.99999974E-6 : f32
    %31 = vector.broadcast %cst_23 : f32 to vector<1x16xf32>
    %32 = arith.addf %28, %31 : vector<1x16xf32>
    %33 = math.rsqrt %32 : vector<1x16xf32>
    %34 = vector.broadcast %33 : vector<1x16xf32> to vector<64x16xf32>
    %35 = arith.mulf %30, %34 : vector<64x16xf32>
    %c0_24 = arith.constant 0 : index
    %c0_25 = arith.constant 0 : index
    %36 = vector.load %arg2[%c0_24, %c0_25] : memref<1x16xf32, #tpu.memory_space<vmem>>, vector<1x16xf32>
    %37 = vector.broadcast %36 : vector<1x16xf32> to vector<64x16xf32>
    %38 = arith.mulf %35, %37 : vector<64x16xf32>
    %c0_26 = arith.constant 0 : index
    %c0_27 = arith.constant 0 : index
    %39 = vector.load %arg3[%c0_26, %c0_27] : memref<1x16xf32, #tpu.memory_space<vmem>>, vector<1x16xf32>
    %40 = vector.broadcast %39 : vector<1x16xf32> to vector<64x16xf32>
    %41 = arith.addf %38, %40 : vector<64x16xf32>
    %cst_28 = arith.constant 0.000000e+00 : f32
    %42 = vector.broadcast %cst_28 : f32 to vector<64x16xf32>
    %43 = arith.cmpf ogt, %41, %42 : vector<64x16xf32>
    %cst_29 = arith.constant 2.000000e-01 : f32
    %44 = vector.broadcast %cst_29 : f32 to vector<64x16xf32>
    %45 = arith.mulf %44, %41 : vector<64x16xf32>
    %46 = arith.select %43, %41, %45 : vector<64x16xi1>, vector<64x16xf32>
    %47 = arith.truncf %46 : vector<64x16xf32> to vector<64x16xbf16>
    %c0_30 = arith.constant 0 : index
    %c0_31 = arith.constant 0 : index
    %48 = vector.load %arg5[%c0_30, %c0_31] : memref<64x16xbf16, #tpu.memory_space<vmem>>, vector<64x16xbf16>
    tpu.vector_store %arg5[%c0_30, %c0_31], %47 {strides = array<i32>} : memref<64x16xbf16, #tpu.memory_space<vmem>>, vector<64x16xbf16>,
    return
  }
}

module attributes {stable_mosaic.version = 11 : i64} {
  func.func @_conv_bn_lrelu_kernel(%arg0: memref<40x64xbf16, #tpu.memory_space<vmem>>, %arg1: memref<4x64x32xbf16, #tpu.memory_space<vmem>>, %arg2: memref<1x32xf32, #tpu.memory_space<vmem>>, %arg3: memref<1x32xf32, #tpu.memory_space<vmem>>, %arg4: memref<1x32xf32, #tpu.memory_space<vmem>>, %arg5: memref<32x32xbf16, #tpu.memory_space<vmem>>) attributes {dimension_semantics = [], scalar_prefetch = 0 : i64, scratch_operands = 0 : i64, tpu.core_type = #tpu.core_type<tc>} {
    %c0 = arith.constant 0 : index
    %c0_0 = arith.constant 0 : index
    %0 = vector.load %arg0[%c0, %c0_0] : memref<40x64xbf16, #tpu.memory_space<vmem>>, vector<32x64xbf16>
    %c0_1 = arith.constant 0 : index
    %c0_2 = arith.constant 0 : index
    %c0_3 = arith.constant 0 : index
    %1 = vector.load %arg1[%c0_1, %c0_2, %c0_3] : memref<4x64x32xbf16, #tpu.memory_space<vmem>>, vector<1x64x32xbf16>
    %2 = vector.shape_cast %1 : vector<1x64x32xbf16> to vector<64x32xbf16>
    %cst = arith.constant dense<0.000000e+00> : vector<32x32xf32>
    %3 = tpu.matmul %0, %2, %cst {dimension_numbers = #tpu.dot_dimension_numbers<[1], [0], [0], [1], [0, 0, 1, 1], [], []>} : vector<32x64xbf16>, vector<64x32xbf16>, vector<32x32xf32> -> vector<32x32xf32>
    %c1 = arith.constant 1 : index
    %c0_4 = arith.constant 0 : index
    %4 = vector.load %arg0[%c1, %c0_4] : memref<40x64xbf16, #tpu.memory_space<vmem>>, vector<32x64xbf16>
    %c1_5 = arith.constant 1 : index
    %c0_6 = arith.constant 0 : index
    %c0_7 = arith.constant 0 : index
    %5 = vector.load %arg1[%c1_5, %c0_6, %c0_7] : memref<4x64x32xbf16, #tpu.memory_space<vmem>>, vector<1x64x32xbf16>
    %6 = vector.shape_cast %5 : vector<1x64x32xbf16> to vector<64x32xbf16>
    %cst_8 = arith.constant dense<0.000000e+00> : vector<32x32xf32>
    %7 = tpu.matmul %4, %6, %cst_8 {dimension_numbers = #tpu.dot_dimension_numbers<[1], [0], [0], [1], [0, 0, 1, 1], [], []>} : vector<32x64xbf16>, vector<64x32xbf16>, vector<32x32xf32> -> vector<32x32xf32>
    %8 = arith.addf %3, %7 : vector<32x32xf32>
    %c3 = arith.constant 3 : index
    %c0_9 = arith.constant 0 : index
    %9 = vector.load %arg0[%c3, %c0_9] : memref<40x64xbf16, #tpu.memory_space<vmem>>, vector<32x64xbf16>
    %c2 = arith.constant 2 : index
    %c0_10 = arith.constant 0 : index
    %c0_11 = arith.constant 0 : index
    %10 = vector.load %arg1[%c2, %c0_10, %c0_11] : memref<4x64x32xbf16, #tpu.memory_space<vmem>>, vector<1x64x32xbf16>
    %11 = vector.shape_cast %10 : vector<1x64x32xbf16> to vector<64x32xbf16>
    %cst_12 = arith.constant dense<0.000000e+00> : vector<32x32xf32>
    %12 = tpu.matmul %9, %11, %cst_12 {dimension_numbers = #tpu.dot_dimension_numbers<[1], [0], [0], [1], [0, 0, 1, 1], [], []>} : vector<32x64xbf16>, vector<64x32xbf16>, vector<32x32xf32> -> vector<32x32xf32>
    %13 = arith.addf %8, %12 : vector<32x32xf32>
    %c4 = arith.constant 4 : index
    %c0_13 = arith.constant 0 : index
    %14 = vector.load %arg0[%c4, %c0_13] : memref<40x64xbf16, #tpu.memory_space<vmem>>, vector<32x64xbf16>
    %c3_14 = arith.constant 3 : index
    %c0_15 = arith.constant 0 : index
    %c0_16 = arith.constant 0 : index
    %15 = vector.load %arg1[%c3_14, %c0_15, %c0_16] : memref<4x64x32xbf16, #tpu.memory_space<vmem>>, vector<1x64x32xbf16>
    %16 = vector.shape_cast %15 : vector<1x64x32xbf16> to vector<64x32xbf16>
    %cst_17 = arith.constant dense<0.000000e+00> : vector<32x32xf32>
    %17 = tpu.matmul %14, %16, %cst_17 {dimension_numbers = #tpu.dot_dimension_numbers<[1], [0], [0], [1], [0, 0, 1, 1], [], []>} : vector<32x64xbf16>, vector<64x32xbf16>, vector<32x32xf32> -> vector<32x32xf32>
    %18 = arith.addf %13, %17 : vector<32x32xf32>
    %c0_18 = arith.constant 0 : index
    %c0_19 = arith.constant 0 : index
    %19 = vector.load %arg4[%c0_18, %c0_19] : memref<1x32xf32, #tpu.memory_space<vmem>>, vector<1x32xf32>
    %cst_20 = arith.constant dense<0.000000e+00> : vector<1x32xf32>
    %20 = tpu.matmul %19, %18, %cst_20 {dimension_numbers = #tpu.dot_dimension_numbers<[1], [0], [0], [1], [0, 0, 1, 1], [], []>} : vector<1x32xf32>, vector<32x32xf32>, vector<1x32xf32> -> vector<1x32xf32>
    %21 = arith.mulf %18, %18 : vector<32x32xf32>
    %cst_21 = arith.constant dense<0.000000e+00> : vector<1x32xf32>
    %22 = tpu.matmul %19, %21, %cst_21 {dimension_numbers = #tpu.dot_dimension_numbers<[1], [0], [0], [1], [0, 0, 1, 1], [], []>} : vector<1x32xf32>, vector<32x32xf32>, vector<1x32xf32> -> vector<1x32xf32>
    %cst_22 = arith.constant 1.250000e-01 : f32
    %23 = vector.broadcast %cst_22 : f32 to vector<1x32xf32>
    %24 = arith.mulf %20, %23 : vector<1x32xf32>
    %cst_23 = arith.constant 1.250000e-01 : f32
    %25 = vector.broadcast %cst_23 : f32 to vector<1x32xf32>
    %26 = arith.mulf %22, %25 : vector<1x32xf32>
    %27 = arith.mulf %24, %24 : vector<1x32xf32>
    %28 = arith.subf %26, %27 : vector<1x32xf32>
    %29 = vector.broadcast %24 : vector<1x32xf32> to vector<32x32xf32>
    %30 = arith.subf %18, %29 : vector<32x32xf32>
    %cst_24 = arith.constant 9.99999974E-6 : f32
    %31 = vector.broadcast %cst_24 : f32 to vector<1x32xf32>
    %32 = arith.addf %28, %31 : vector<1x32xf32>
    %33 = math.rsqrt %32 : vector<1x32xf32>
    %34 = vector.broadcast %33 : vector<1x32xf32> to vector<32x32xf32>
    %35 = arith.mulf %30, %34 : vector<32x32xf32>
    %c0_25 = arith.constant 0 : index
    %c0_26 = arith.constant 0 : index
    %36 = vector.load %arg2[%c0_25, %c0_26] : memref<1x32xf32, #tpu.memory_space<vmem>>, vector<1x32xf32>
    %37 = vector.broadcast %36 : vector<1x32xf32> to vector<32x32xf32>
    %38 = arith.mulf %35, %37 : vector<32x32xf32>
    %c0_27 = arith.constant 0 : index
    %c0_28 = arith.constant 0 : index
    %39 = vector.load %arg3[%c0_27, %c0_28] : memref<1x32xf32, #tpu.memory_space<vmem>>, vector<1x32xf32>
    %40 = vector.broadcast %39 : vector<1x32xf32> to vector<32x32xf32>
    %41 = arith.addf %38, %40 : vector<32x32xf32>
    %cst_29 = arith.constant 0.000000e+00 : f32
    %42 = vector.broadcast %cst_29 : f32 to vector<32x32xf32>
    %43 = arith.cmpf ogt, %41, %42 : vector<32x32xf32>
    %cst_30 = arith.constant 2.000000e-01 : f32
    %44 = vector.broadcast %cst_30 : f32 to vector<32x32xf32>
    %45 = arith.mulf %44, %41 : vector<32x32xf32>
    %46 = arith.select %43, %41, %45 : vector<32x32xi1>, vector<32x32xf32>
    %47 = arith.truncf %46 : vector<32x32xf32> to vector<32x32xbf16>
    %c0_31 = arith.constant 0 : index
    %c0_32 = arith.constant 0 : index
    %48 = vector.load %arg5[%c0_31, %c0_32] : memref<32x32xbf16, #tpu.memory_space<vmem>>, vector<32x32xbf16>
    tpu.vector_store %arg5[%c0_31, %c0_32], %47 {strides = array<i32>} : memref<32x32xbf16, #tpu.memory_space<vmem>>, vector<32x32xbf16>,
    return
  }
}

module attributes {stable_mosaic.version = 11 : i64} {
  func.func @_conv_bn_lrelu_kernel(%arg0: memref<24x128xbf16, #tpu.memory_space<vmem>>, %arg1: memref<4x128x64xbf16, #tpu.memory_space<vmem>>, %arg2: memref<1x64xf32, #tpu.memory_space<vmem>>, %arg3: memref<1x64xf32, #tpu.memory_space<vmem>>, %arg4: memref<1x16xf32, #tpu.memory_space<vmem>>, %arg5: memref<16x64xbf16, #tpu.memory_space<vmem>>) attributes {dimension_semantics = [], scalar_prefetch = 0 : i64, scratch_operands = 0 : i64, tpu.core_type = #tpu.core_type<tc>} {
    %c0 = arith.constant 0 : index
    %c0_0 = arith.constant 0 : index
    %0 = vector.load %arg0[%c0, %c0_0] : memref<24x128xbf16, #tpu.memory_space<vmem>>, vector<16x128xbf16>
    %c0_1 = arith.constant 0 : index
    %c0_2 = arith.constant 0 : index
    %c0_3 = arith.constant 0 : index
    %1 = vector.load %arg1[%c0_1, %c0_2, %c0_3] : memref<4x128x64xbf16, #tpu.memory_space<vmem>>, vector<1x128x64xbf16>
    %2 = vector.shape_cast %1 : vector<1x128x64xbf16> to vector<128x64xbf16>
    %cst = arith.constant dense<0.000000e+00> : vector<16x64xf32>
    %3 = tpu.matmul %0, %2, %cst {dimension_numbers = #tpu.dot_dimension_numbers<[1], [0], [0], [1], [0, 0, 1, 1], [], []>} : vector<16x128xbf16>, vector<128x64xbf16>, vector<16x64xf32> -> vector<16x64xf32>
    %c1 = arith.constant 1 : index
    %c0_4 = arith.constant 0 : index
    %4 = vector.load %arg0[%c1, %c0_4] : memref<24x128xbf16, #tpu.memory_space<vmem>>, vector<16x128xbf16>
    %c1_5 = arith.constant 1 : index
    %c0_6 = arith.constant 0 : index
    %c0_7 = arith.constant 0 : index
    %5 = vector.load %arg1[%c1_5, %c0_6, %c0_7] : memref<4x128x64xbf16, #tpu.memory_space<vmem>>, vector<1x128x64xbf16>
    %6 = vector.shape_cast %5 : vector<1x128x64xbf16> to vector<128x64xbf16>
    %cst_8 = arith.constant dense<0.000000e+00> : vector<16x64xf32>
    %7 = tpu.matmul %4, %6, %cst_8 {dimension_numbers = #tpu.dot_dimension_numbers<[1], [0], [0], [1], [0, 0, 1, 1], [], []>} : vector<16x128xbf16>, vector<128x64xbf16>, vector<16x64xf32> -> vector<16x64xf32>
    %8 = arith.addf %3, %7 : vector<16x64xf32>
    %c2 = arith.constant 2 : index
    %c0_9 = arith.constant 0 : index
    %9 = vector.load %arg0[%c2, %c0_9] : memref<24x128xbf16, #tpu.memory_space<vmem>>, vector<16x128xbf16>
    %c2_10 = arith.constant 2 : index
    %c0_11 = arith.constant 0 : index
    %c0_12 = arith.constant 0 : index
    %10 = vector.load %arg1[%c2_10, %c0_11, %c0_12] : memref<4x128x64xbf16, #tpu.memory_space<vmem>>, vector<1x128x64xbf16>
    %11 = vector.shape_cast %10 : vector<1x128x64xbf16> to vector<128x64xbf16>
    %cst_13 = arith.constant dense<0.000000e+00> : vector<16x64xf32>
    %12 = tpu.matmul %9, %11, %cst_13 {dimension_numbers = #tpu.dot_dimension_numbers<[1], [0], [0], [1], [0, 0, 1, 1], [], []>} : vector<16x128xbf16>, vector<128x64xbf16>, vector<16x64xf32> -> vector<16x64xf32>
    %13 = arith.addf %8, %12 : vector<16x64xf32>
    %c3 = arith.constant 3 : index
    %c0_14 = arith.constant 0 : index
    %14 = vector.load %arg0[%c3, %c0_14] : memref<24x128xbf16, #tpu.memory_space<vmem>>, vector<16x128xbf16>
    %c3_15 = arith.constant 3 : index
    %c0_16 = arith.constant 0 : index
    %c0_17 = arith.constant 0 : index
    %15 = vector.load %arg1[%c3_15, %c0_16, %c0_17] : memref<4x128x64xbf16, #tpu.memory_space<vmem>>, vector<1x128x64xbf16>
    %16 = vector.shape_cast %15 : vector<1x128x64xbf16> to vector<128x64xbf16>
    %cst_18 = arith.constant dense<0.000000e+00> : vector<16x64xf32>
    %17 = tpu.matmul %14, %16, %cst_18 {dimension_numbers = #tpu.dot_dimension_numbers<[1], [0], [0], [1], [0, 0, 1, 1], [], []>} : vector<16x128xbf16>, vector<128x64xbf16>, vector<16x64xf32> -> vector<16x64xf32>
    %18 = arith.addf %13, %17 : vector<16x64xf32>
    %c0_19 = arith.constant 0 : index
    %c0_20 = arith.constant 0 : index
    %19 = vector.load %arg4[%c0_19, %c0_20] : memref<1x16xf32, #tpu.memory_space<vmem>>, vector<1x16xf32>
    %cst_21 = arith.constant dense<0.000000e+00> : vector<1x64xf32>
    %20 = tpu.matmul %19, %18, %cst_21 {dimension_numbers = #tpu.dot_dimension_numbers<[1], [0], [0], [1], [0, 0, 1, 1], [], []>} : vector<1x16xf32>, vector<16x64xf32>, vector<1x64xf32> -> vector<1x64xf32>
    %21 = arith.mulf %18, %18 : vector<16x64xf32>
    %cst_22 = arith.constant dense<0.000000e+00> : vector<1x64xf32>
    %22 = tpu.matmul %19, %21, %cst_22 {dimension_numbers = #tpu.dot_dimension_numbers<[1], [0], [0], [1], [0, 0, 1, 1], [], []>} : vector<1x16xf32>, vector<16x64xf32>, vector<1x64xf32> -> vector<1x64xf32>
    %cst_23 = arith.constant 5.000000e-01 : f32
    %23 = vector.broadcast %cst_23 : f32 to vector<1x64xf32>
    %24 = arith.mulf %20, %23 : vector<1x64xf32>
    %cst_24 = arith.constant 5.000000e-01 : f32
    %25 = vector.broadcast %cst_24 : f32 to vector<1x64xf32>
    %26 = arith.mulf %22, %25 : vector<1x64xf32>
    %27 = arith.mulf %24, %24 : vector<1x64xf32>
    %28 = arith.subf %26, %27 : vector<1x64xf32>
    %29 = vector.broadcast %24 : vector<1x64xf32> to vector<16x64xf32>
    %30 = arith.subf %18, %29 : vector<16x64xf32>
    %cst_25 = arith.constant 9.99999974E-6 : f32
    %31 = vector.broadcast %cst_25 : f32 to vector<1x64xf32>
    %32 = arith.addf %28, %31 : vector<1x64xf32>
    %33 = math.rsqrt %32 : vector<1x64xf32>
    %34 = vector.broadcast %33 : vector<1x64xf32> to vector<16x64xf32>
    %35 = arith.mulf %30, %34 : vector<16x64xf32>
    %c0_26 = arith.constant 0 : index
    %c0_27 = arith.constant 0 : index
    %36 = vector.load %arg2[%c0_26, %c0_27] : memref<1x64xf32, #tpu.memory_space<vmem>>, vector<1x64xf32>
    %37 = vector.broadcast %36 : vector<1x64xf32> to vector<16x64xf32>
    %38 = arith.mulf %35, %37 : vector<16x64xf32>
    %c0_28 = arith.constant 0 : index
    %c0_29 = arith.constant 0 : index
    %39 = vector.load %arg3[%c0_28, %c0_29] : memref<1x64xf32, #tpu.memory_space<vmem>>, vector<1x64xf32>
    %40 = vector.broadcast %39 : vector<1x64xf32> to vector<16x64xf32>
    %41 = arith.addf %38, %40 : vector<16x64xf32>
    %cst_30 = arith.constant 0.000000e+00 : f32
    %42 = vector.broadcast %cst_30 : f32 to vector<16x64xf32>
    %43 = arith.cmpf ogt, %41, %42 : vector<16x64xf32>
    %cst_31 = arith.constant 2.000000e-01 : f32
    %44 = vector.broadcast %cst_31 : f32 to vector<16x64xf32>
    %45 = arith.mulf %44, %41 : vector<16x64xf32>
    %46 = arith.select %43, %41, %45 : vector<16x64xi1>, vector<16x64xf32>
    %47 = arith.truncf %46 : vector<16x64xf32> to vector<16x64xbf16>
    %c0_32 = arith.constant 0 : index
    %c0_33 = arith.constant 0 : index
    %48 = vector.load %arg5[%c0_32, %c0_33] : memref<16x64xbf16, #tpu.memory_space<vmem>>, vector<16x64xbf16>
    tpu.vector_store %arg5[%c0_32, %c0_33], %47 {strides = array<i32>} : memref<16x64xbf16, #tpu.memory_space<vmem>>, vector<16x64xbf16>,
    return
  }
}

module attributes {stable_mosaic.version = 11 : i64} {
  func.func @_head_kernel(%arg0: memref<2x64xbf16, #tpu.memory_space<vmem>>, %arg1: memref<64x128xbf16, #tpu.memory_space<vmem>>, %arg2: memref<1x128xf32, #tpu.memory_space<vmem>>, %arg3: memref<2x128xf32, #tpu.memory_space<vmem>>) attributes {dimension_semantics = [], scalar_prefetch = 0 : i64, scratch_operands = 0 : i64, tpu.core_type = #tpu.core_type<tc>} {
    %c0 = arith.constant 0 : index
    %c0_0 = arith.constant 0 : index
    %0 = vector.load %arg0[%c0, %c0_0] : memref<2x64xbf16, #tpu.memory_space<vmem>>, vector<2x64xbf16>
    %c0_1 = arith.constant 0 : index
    %c0_2 = arith.constant 0 : index
    %1 = vector.load %arg1[%c0_1, %c0_2] : memref<64x128xbf16, #tpu.memory_space<vmem>>, vector<64x128xbf16>
    %cst = arith.constant dense<0.000000e+00> : vector<2x128xf32>
    %2 = tpu.matmul %0, %1, %cst {dimension_numbers = #tpu.dot_dimension_numbers<[1], [0], [0], [1], [0, 0, 1, 1], [], []>} : vector<2x64xbf16>, vector<64x128xbf16>, vector<2x128xf32> -> vector<2x128xf32>
    %c0_3 = arith.constant 0 : index
    %c0_4 = arith.constant 0 : index
    %3 = vector.load %arg2[%c0_3, %c0_4] : memref<1x128xf32, #tpu.memory_space<vmem>>, vector<1x128xf32>
    %4 = vector.broadcast %3 : vector<1x128xf32> to vector<2x128xf32>
    %5 = arith.addf %2, %4 : vector<2x128xf32>
    %6 = tpu.iota {dimensions = array<i32: 1>} : vector<2x128xi32>
    %c1_i32 = arith.constant 1 : i32
    %7 = vector.broadcast %c1_i32 : i32 to vector<2x128xi32>
    %8 = arith.cmpi sge, %6, %7 : vector<2x128xi32>
    %c11_i32 = arith.constant 11 : i32
    %9 = vector.broadcast %c11_i32 : i32 to vector<2x128xi32>
    %10 = arith.cmpi slt, %6, %9 : vector<2x128xi32>
    %11 = arith.andi %8, %10 : vector<2x128xi1>
    %cst_5 = arith.constant -1.000000e+30 : f32
    %12 = vector.broadcast %cst_5 : f32 to vector<2x128xf32>
    %13 = arith.select %11, %5, %12 : vector<2x128xi1>, vector<2x128xf32>
    %cst_6 = arith.constant dense<0xFF800000> : vector<2xf32>
    %14 = vector.multi_reduction <maximumf>, %13, %cst_6 [1] : vector<2x128xf32> to vector<2xf32>
    %15 = vector.shape_cast %14 : vector<2xf32> to vector<2x1xf32>
    %16 = vector.broadcast %15 : vector<2x1xf32> to vector<2x128xf32>
    %17 = arith.subf %5, %16 : vector<2x128xf32>
    %18 = math.exp %17 : vector<2x128xf32>
    %cst_7 = arith.constant 0.000000e+00 : f32
    %19 = vector.broadcast %cst_7 : f32 to vector<2x128xf32>
    %20 = arith.select %11, %18, %19 : vector<2x128xi1>, vector<2x128xf32>
    %cst_8 = arith.constant dense<0.000000e+00> : vector<2xf32>
    %21 = vector.multi_reduction <add>, %20, %cst_8 [1] : vector<2x128xf32> to vector<2xf32>
    %22 = vector.shape_cast %21 : vector<2xf32> to vector<2x1xf32>
    %23 = tpu.reciprocal %22 {approx = true} : vector<2x1xf32> -> vector<2x1xf32>
    %24 = arith.mulf %22, %23 : vector<2x1xf32>
    %cst_9 = arith.constant 2.000000e+00 : f32
    %25 = vector.broadcast %cst_9 : f32 to vector<2x1xf32>
    %26 = arith.subf %25, %24 : vector<2x1xf32>
    %27 = arith.mulf %23, %26 : vector<2x1xf32>
    %c0_i32 = arith.constant 0 : i32
    %28 = vector.broadcast %c0_i32 : i32 to vector<2x128xi32>
    %29 = arith.cmpi eq, %6, %28 : vector<2x128xi32>
    %30 = vector.broadcast %27 : vector<2x1xf32> to vector<2x128xf32>
    %31 = arith.mulf %20, %30 : vector<2x128xf32>
    %32 = arith.select %29, %5, %31 : vector<2x128xi1>, vector<2x128xf32>
    %c0_10 = arith.constant 0 : index
    %c0_11 = arith.constant 0 : index
    %33 = vector.load %arg3[%c0_10, %c0_11] : memref<2x128xf32, #tpu.memory_space<vmem>>, vector<2x128xf32>
    tpu.vector_store %arg3[%c0_10, %c0_11], %32 {strides = array<i32>} : memref<2x128xf32, #tpu.memory_space<vmem>>, vector<2x128xf32>,
    return
  }
}

</mosaic_0001>

<llo_original>
// kernel: tile.18
$region0: #{tile.18}
  #allocation0 [shape = 's32[1]{0}', space=sflag, size = 0x4, scoped, tag = 'scoped memory for tile.18']
  %s0 = inlined_call_operand.vmem [shape: f32[32], index: 0, kind: input, shape index: {}]
  %s1 = inlined_call_operand.vmem [shape: f32[2,32], index: 1, kind: output, shape index: {}]
  // Predicated region
  $region2: #{tile.18} parent=0 // pred_check
    _
  $region3: #{tile.18} parent=0 // pred_check_branch
    %3 = sbr.rel (0) target = $region5
  $region4: #{tile.18} parent=0 // pred_region
    _
  $region5: #{tile.18} parent=0 // pred_fallthru
    _
  %v4 = vld [vmem:[%s0] ss:$0 sm:$0xff]
  %5 = vst [vmem:[%s1] sm:$0x3] %v4

// kernel: tile.19
$region0: #{tile.19}
  %s0 = inlined_call_operand.vmem [shape: f32[2,32], index: 0, kind: input, shape index: {}]
  %s1 = inlined_call_operand.vmem [shape: f32[1,64], index: 1, kind: output, shape index: {}]
  $region1: #{tile.19} parent=0
    #allocation0 [shape = 'u8[4096]{0}', space=vmem, size = 0x1000, scoped, tag = 'scoped mem for output reshape']
    #allocation1 [shape = 'u8[4096]{0}', space=vmem, size = 0x1000, scoped, tag = 'scoped mem for input reshape']
    %s3 = ssub.s32 4, 1
    %v4 = vld [vmem:[%s0] sm:%s3]
    %5 = vst [vmem:[#allocation1] sm:%s3] %v4
    %v6 = vld [vmem:[#allocation1] sm:$0x1]
    %vm7 = vcmask 261120
    %8 = vst.msk [vmem:[#allocation0] sm:$0x1] %vm7, %v6
    %s9 = scalar_lea.vmem [#allocation1], 1
    %v10 = vld [vmem:[%s9] sm:$0x1]
    %11 = vrot.lane.b32.xlu0 %v10, 32
    %v12 = vpop.permute.xlu0 %11
    %vm13 = vcmask 523520
    %14 = vst.msk [vmem:[#allocation0] sm:$0x1] %vm13, %v12
    %s16 = ssub.s32 2, 1
    %v17 = vld [vmem:[#allocation0] sm:%s16]
    %s19 = ssub.s32 2, 1
    %20 = vst [vmem:[%s1] sm:%s19] %v17

// kernel: tile.23
$region0: #{tile.23}
  #allocation0 [shape = 's32[1]{0}', space=sflag, size = 0x4, scoped, tag = 'scoped memory for tile.23']
  %s0 = inlined_call_operand.vmem [shape: f32[16], index: 0, kind: input, shape index: {}]
  %s1 = inlined_call_operand.vmem [shape: f32[2,16], index: 1, kind: output, shape index: {}]
  // Predicated region
  $region2: #{tile.23} parent=0 // pred_check
    _
  $region3: #{tile.23} parent=0 // pred_check_branch
    %3 = sbr.rel (0) target = $region5
  $region4: #{tile.23} parent=0 // pred_region
    _
  $region5: #{tile.23} parent=0 // pred_fallthru
    _
  %v4 = vld [vmem:[%s0] ss:$0 sm:$0xff]
  %5 = vst [vmem:[%s1] sm:$0x3] %v4

// kernel: discriminator_forward.5
$region0: #{discriminator_forward.5}
  #allocation0 [shape = 'u32[]', space=smem, size = 0x4, offset = 0x4, fixed_abs, tag = 'smem constant byte address 0x4 - core index']
  #allocation1 [shape = 'u32[72,128]{1,0:T(1,128)}', space=vmem, size = 0x9000, scoped, tag = 'internal scratch']
  %s0 = inlined_call_operand.vmem [shape: bf16[2,104,16], index: 0, kind: input, shape index: {}]
  %s1 = inlined_call_operand.vmem [shape: bf16[4,16,8], index: 1, kind: input, shape index: {}]
  %s2 = inlined_call_operand.vmem [shape: f32[1,8], index: 2, kind: input, shape index: {}]
  %s3 = inlined_call_operand.vmem [shape: bf16[2,88,8], index: 3, kind: output, shape index: {}]
  %s4 = sld [smem:[#allocation0]]
  $region45: #{discriminator_forward.5} parent=0
    _
  %s6 = ssub.s32 1, %s4
  %s7 = scalar_select 0, %s6, %s4
  loop: start=0, step=1, limit=4
  $region2: #{discriminator_forward.5} parent=0 // loop_pre_header
    _
  $region3: #{discriminator_forward.5} parent=0 // loop_header
    %s9 = sphi 0, %s13
    %p10 = scmp.ge.s32.totalorder %s9, 4
    %s19 = sphi 0, %s21
    %s22 = sphi 0, %s19
    %s23 = sphi 0, %s22
    %s39 = sphi 0, %s23
    %s43 = sphi 0, %s43
    %s45 = sphi 0, %s43
    %s46 = sphi 0, %s45
    %s60 = sphi 0, %s46
    %s64 = sphi 0, %s64
    %s66 = sphi 0, %s64
    %s67 = sphi 0, %s66
    %s81 = sphi 0, %s67
    %s87 = sphi 0, %s89
    %s90 = sphi 0, %s87
    %s91 = sphi 0, %s90
    %s107 = sphi 0, %s91
  $region4: #{discriminator_forward.5} parent=0 // loop_header_branch
    %12 = sbr.rel (%p10) target = $region8
  $region5: #{discriminator_forward.5} parent=0 // loop_body
    %s14 = ssub.s32 %s9, 1
    %s15 = ssub.s32 %s9, 2
    %s16 = sadd.s32 %s9, 1
    %s17 = ssub.s32 %s9, %s16
    %p18 = scmp.eq.s32.totalorder %s17, 0
    %s20 = sadd.s32 %s19, 1
    %s21 = scalar_select %p18, %s19, %s20
    %p24 = pneg %p18
    %p25 = scmp.eq.s32.totalorder %s9, 1
    %p26 = por %p24, %p25
    %p27 = scmp.ne.s32.totalorder %s19, %s22
    %p28 = scmp.eq.s32.totalorder %s9, 0
    %p29 = por %p27, %p28
    %p30 = scmp.ne.s32.totalorder %s19, %s22
    %p31 = scmp.eq.s32.totalorder %s14, 1
    %p32 = por %p30, %p31
    %p33 = scmp.ne.s32.totalorder %s22, %s23
    %p34 = scmp.eq.s32.totalorder %s14, 0
    %p35 = por %p33, %p34
    %p36 = scmp.ne.s32.totalorder %s22, %s23
    %p37 = scmp.eq.s32.totalorder %s15, 1
    %p38 = por %p36, %p37
    %p40 = scmp.ne.s32.totalorder %s23, %s39
    %p41 = scmp.eq.s32.totalorder %s15, 0
    %p42 = por %p40, %p41
    %s44 = sadd.s32 %s43, 1
    %p47 = scmp.eq.s32.totalorder %s9, 1
    %p48 = scmp.ne.s32.totalorder %s43, %s45
    %p49 = scmp.eq.s32.totalorder %s9, 0
    %p50 = por %p48, %p49
    %p51 = scmp.ne.s32.totalorder %s43, %s45
    %p52 = scmp.eq.s32.totalorder %s14, 1
    %p53 = por %p51, %p52
    %p54 = scmp.ne.s32.totalorder %s45, %s46
    %p55 = scmp.eq.s32.totalorder %s14, 0
    %p56 = por %p54, %p55
    %p57 = scmp.ne.s32.totalorder %s45, %s46
    %p58 = scmp.eq.s32.totalorder %s15, 1
    %p59 = por %p57, %p58
    %p61 = scmp.ne.s32.totalorder %s46, %s60
    %p62 = scmp.eq.s32.totalorder %s15, 0
    %p63 = por %p61, %p62
    %s65 = sadd.s32 %s64, 1
    %p68 = scmp.eq.s32.totalorder %s9, 1
    %p69 = scmp.ne.s32.totalorder %s64, %s66
    %p70 = scmp.eq.s32.totalorder %s9, 0
    %p71 = por %p69, %p70
    %p72 = scmp.ne.s32.totalorder %s64, %s66
    %p73 = scmp.eq.s32.totalorder %s14, 1
    %p74 = por %p72, %p73
    %p75 = scmp.ne.s32.totalorder %s66, %s67
    %p76 = scmp.eq.s32.totalorder %s14, 0
    %p77 = por %p75, %p76
    %p78 = scmp.ne.s32.totalorder %s66, %s67
    %p79 = scmp.eq.s32.totalorder %s15, 1
    %p80 = por %p78, %p79
    %p82 = scmp.ne.s32.totalorder %s67, %s81
    %p83 = scmp.eq.s32.totalorder %s15, 0
    %p84 = por %p82, %p83
    %s85 = ssub.s32 %s9, %s16
    %p86 = scmp.eq.s32.totalorder %s85, 0
    %s88 = sadd.s32 %s87, 1
    %s89 = scalar_select %p86, %s87, %s88
    %p92 = pneg %p86
    %p93 = scmp.eq.s32.totalorder %s9, 1
    %p94 = por %p92, %p93
    %p95 = scmp.ne.s32.totalorder %s87, %s90
    %p96 = scmp.eq.s32.totalorder %s9, 0
    %p97 = por %p95, %p96
    %p98 = scmp.ne.s32.totalorder %s87, %s90
    %p99 = scmp.eq.s32.totalorder %s14, 1
    %p100 = por %p98, %p99
    %p101 = scmp.ne.s32.totalorder %s90, %s91
    %p102 = scmp.eq.s32.totalorder %s14, 0
    %p103 = por %p101, %p102
    %p104 = scmp.ne.s32.totalorder %s90, %s91
    %p105 = scmp.eq.s32.totalorder %s15, 1
    %p106 = por %p104, %p105
    %p108 = scmp.ne.s32.totalorder %s91, %s107
    %p109 = scmp.eq.s32.totalorder %s15, 0
    %p110 = por %p108, %p109
    %p111 = scmp.le.s32.totalorder 1, %s9
    %p112 = scmp.lt.s32.totalorder %s9, 3
    %p113 = pnand %p111, %p112
    %p114 = pneg %p113
    // Predicated region
    $region9: #{discriminator_forward.5} parent=5 // pred_check
      _
    $region10: #{discriminator_forward.5} parent=5 // pred_check_branch
      %116 = sbr.rel (%p113) target = $region12
    $region11: #{discriminator_forward.5} parent=5 // pred_region
      %s117 = ssub.s32 %s9, 1
      // Predicated region
      $region13: #{discriminator_forward.5} parent=11 // pred_check
        %p118 = pneg %p56
      $region14: #{discriminator_forward.5} parent=11 // pred_check_branch
        %120 = sbr.rel (%p118) target = $region16
      $region15: #{discriminator_forward.5} parent=11 // pred_region
        _
      $region16: #{discriminator_forward.5} parent=11 // pred_fallthru
        _
      // Predicated region
      $region17: #{discriminator_forward.5} parent=11 // pred_check
        %p121 = pneg %p77
      $region18: #{discriminator_forward.5} parent=11 // pred_check_branch
        %123 = sbr.rel (%p121) target = $region20
      $region19: #{discriminator_forward.5} parent=11 // pred_region
        _
      $region20: #{discriminator_forward.5} parent=11 // pred_fallthru
        _
    $region12: #{discriminator_forward.5} parent=5 // pred_fallthru
      _
    %p124 = scmp.lt.s32.totalorder %s9, 2
    // Predicated region
    $region21: #{discriminator_forward.5} parent=5 // pred_check
      %p125 = pneg %p124
    $region22: #{discriminator_forward.5} parent=5 // pred_check_branch
      %127 = sbr.rel (%p125) target = $region24
    $region23: #{discriminator_forward.5} parent=5 // pred_region
      // Predicated region
      $region25: #{discriminator_forward.5} parent=23 // pred_check
        %p128 = pneg %p29
      $region26: #{discriminator_forward.5} parent=23 // pred_check_branch
        %130 = sbr.rel (%p128) target = $region28
      $region27: #{discriminator_forward.5} parent=23 // pred_region
        %p131 = scmp.lt.s32.totalorder %s9, 1
        %s132 = scalar_select %p131, %s9, 1
        %s133 = smul.addr %s132, 13
        %s134 = smul.addr %s133, 4
        %s135 = scalar_lea.vmem %s0, %s134
      $region28: #{discriminator_forward.5} parent=23 // pred_fallthru
        _
    $region24: #{discriminator_forward.5} parent=5 // pred_fallthru
      _
    %p136 = scmp.le.s32.totalorder 1, %s9
    %p137 = scmp.lt.s32.totalorder %s9, 3
    %p138 = pnand %p136, %p137
    %p139 = pneg %p138
    // Predicated region
    $region29: #{discriminator_forward.5} parent=5 // pred_check
      _
    $region30: #{discriminator_forward.5} parent=5 // pred_check_branch
      %141 = sbr.rel (%p138) target = $region32
    $region31: #{discriminator_forward.5} parent=5 // pred_region
      %s142 = ssub.s32 %s9, 1
      %p143 = scmp.lt.s32.totalorder %s14, 1
      %s144 = scalar_select %p143, %s14, 1
      %s145 = smul.addr %s144, 13
      %s146 = smul.addr %s145, 4
      %s147 = scalar_lea.vmem %s0, %s146
      %p148 = pneg %p35
      %p149 = pneg %p32
      %p150 = pneg %p56
      %p151 = pneg %p53
      %p152 = pneg %p77
      %p153 = pneg %p74
      %p154 = pneg %p103
      %p155 = pneg %p100
      %p156 = scmp.lt.s32.totalorder %s14, 1
      %s157 = scalar_select %p156, %s14, 1
      %s158 = smul.addr %s157, 11
      %s159 = smul.addr %s158, 4
      %s160 = scalar_lea.vmem %s3, %s159
      %p161 = scmp.lt.s32.totalorder %s14, 1
      %s162 = scalar_select %p161, %s14, 1
      %s163 = smul.addr %s162, 13
      %s164 = smul.addr %s163, 4
      %s165 = scalar_lea.vmem %s0, %s164
      %p166 = scmp.lt.s32.totalorder %s14, 1
      %s167 = scalar_select %p166, %s14, 1
      %s168 = smul.addr %s167, 11
      %s169 = smul.addr %s168, 4
      %s170 = scalar_lea.vmem %s3, %s169
      %v172 = vld [vmem:[%s165] sm:$0xf]
      %v173 = vld [vmem:[%s165 + $0x4] sm:$0xf]
      %v174 = vld [vmem:[%s165 + $0x8] sm:$0xf]
      %v175 = vld [vmem:[%s165 + $0xc] sm:$0xf]
      %v176 = vld [vmem:[%s165 + $0x10] sm:$0xf]
      %v177 = vld [vmem:[%s165 + $0x14] sm:$0xf]
      %v178 = vld [vmem:[%s165 + $0x18] sm:$0xf]
      %v179 = vld [vmem:[%s165 + $0x1c] sm:$0xf]
      %v180 = vld [vmem:[%s165 + $0x20] sm:$0xf]
      %v181 = vld [vmem:[%s165 + $0x24] sm:$0xf]
      %v182 = vld [vmem:[%s165 + $0x28] sm:$0xf]
      %v183 = vld [vmem:[%s1] sm:$0xf]
      %v184 = vld [vmem:[%s1 + $0x4] sm:$0xf]
      %v185 = vld [vmem:[%s165 + $0x2c] sm:$0x1]
      %s186 = scalar_lea.vmem %s1, 8
      %v187 = vld [vmem:[%s186] sm:$0xf]
      %v188 = vld [vmem:[%s186 + $0x4] sm:$0xf]
      %v201 = vunpack.c.l.b16 %v172
      %v202 = vunpack.c.l.b16 %v173
      %v203 = vunpack.c.l.b16 %v174
      %v204 = vunpack.c.l.b16 %v175
      %v205 = vunpack.c.l.b16 %v176
      %v206 = vunpack.c.l.b16 %v177
      %v207 = vunpack.c.l.b16 %v178
      %v208 = vunpack.c.l.b16 %v179
      %v209 = vunpack.c.l.b16 %v180
      %v210 = vunpack.c.l.b16 %v181
      %v211 = vunpack.c.l.b16 %v182
      %v212 = vunpack.c.l.b16 %v185
      %v213 = vpack.c.b16 %v202, %v201
      %v214 = vpack.c.b16 %v204, %v203
      %v215 = vpack.c.b16 %v206, %v205
      %v216 = vpack.c.b16 %v208, %v207
      %v217 = vpack.c.b16 %v210, %v209
      %v218 = vpack.c.b16 %v212, %v211
      %vm219 = vsmask.f32 7424
      %v221 = vshrl.u32 %v213, 16
      %v223 = vshll.u32 %v213, 16
      %v225 = vrot.slane %v223, 1
      %v226 = vor.u32 %v221, %v225
      %v228 = vshll.u32 %v214, 16
      %v230 = vrot.slane %v228, 1
      %v231 = vsel %vm219, %v226, %v230
      %v232 = vshrl.u32 %v214, 16
      %v234 = vor.u32 %v232, %v230
      %v236 = vshll.u32 %v215, 16
      %v238 = vrot.slane %v236, 1
      %v239 = vsel %vm219, %v234, %v238
      %v240 = vshrl.u32 %v215, 16
      %v242 = vor.u32 %v240, %v238
      %v244 = vshll.u32 %v216, 16
      %v246 = vrot.slane %v244, 1
      %v247 = vsel %vm219, %v242, %v246
      %v248 = vshrl.u32 %v216, 16
      %v250 = vor.u32 %v248, %v246
      %v252 = vshll.u32 %v217, 16
      %v254 = vrot.slane %v252, 1
      %v255 = vsel %vm219, %v250, %v254
      %v256 = vshrl.u32 %v217, 16
      %v258 = vor.u32 %v256, %v254
      %v260 = vshll.u32 %v218, 16
      %v262 = vrot.slane %v260, 1
      %v263 = vsel %vm219, %v258, %v262
      %v264 = vshrl.u32 %v218, 16
      %v266 = vor.u32 %v264, %v262
      %v269 = vunpack.c.l.b16 %v187
      %v270 = vunpack.c.l.b16 %v188
      %v271 = vpack.c.b16 %v270, %v269
      %vm273 = vcmask 130048
      %v275 = vsel %vm273, %v231, 0
      %v278 = vsel %vm273, %v239, 0
      %v281 = vsel %vm273, %v247, 0
      %v284 = vsel %vm273, %v255, 0
      %v287 = vsel %vm273, %v263, 0
      %v290 = vsel %vm273, %v266, 0
      %292 = vmatpush.bf16.msra.mxu0 0
      %293 = vmatpush.bf16.msra.mxu0 0
      %294 = vmatpush.bf16.msra.mxu0 0
      %295 = vmatpush.bf16.msra.mxu0 0
      %296 = vmatpush.bf16.msra.mxu0 0
      %297 = vmatpush.bf16.msra.mxu0 0
      %298 = vmatpush.bf16.msra.mxu0 0
      %299 = vmatpush.bf16.msra.mxu0 %v271
      %300 = vmatmul.bf16.gmra.mxu0 %v275
      %v301 = vpop.f32.mrf.mxu0
      %v302 = vadd.f32 0.0, %v301
      %v303 = vpop.f32.mrf.mxu0
      %v304 = vadd.f32 0.0, %v303
      %305 = vmatmul.bf16.gmra.mxu0 %v278
      %v306 = vpop.f32.mrf.mxu0
      %v307 = vadd.f32 0.0, %v306
      %v308 = vpop.f32.mrf.mxu0
      %v309 = vadd.f32 0.0, %v308
      %310 = vmatmul.bf16.gmra.mxu0 %v281
      %v311 = vpop.f32.mrf.mxu0
      %v312 = vadd.f32 0.0, %v311
      %v313 = vpop.f32.mrf.mxu0
      %v314 = vadd.f32 0.0, %v313
      %315 = vmatmul.bf16.gmra.mxu0 %v284
      %v316 = vpop.f32.mrf.mxu0
      %v317 = vadd.f32 0.0, %v316
      %v318 = vpop.f32.mrf.mxu0
      %v319 = vadd.f32 0.0, %v318
      %320 = vmatmul.bf16.gmra.mxu0 %v287
      %v321 = vpop.f32.mrf.mxu0
      %v322 = vadd.f32 0.0, %v321
      %v323 = vpop.f32.mrf.mxu0
      %v324 = vadd.f32 0.0, %v323
      %325 = vmatmul.bf16.gmra.mxu0 %v290
      %v326 = vpop.f32.mrf.mxu0
      %v327 = vadd.f32 0.0, %v326
      %v328 = vpop.f32.mrf.mxu0
      %329 = vdwg.mxu0
      %v330 = vpack.c.b16 %v211, %v211
      %v333 = vunpack.c.l.b16 %v183
      %v334 = vunpack.c.l.b16 %v184
      %v335 = vpack.c.b16 %v334, %v333
      %v337 = vsel %vm273, %v213, 0
      %v339 = vsel %vm273, %v214, 0
      %v341 = vsel %vm273, %v215, 0
      %v343 = vsel %vm273, %v216, 0
      %v345 = vsel %vm273, %v217, 0
      %v348 = vsel %vm273, %v330, 0
      %350 = vmatpush.bf16.msra.mxu0 0
      %351 = vmatpush.bf16.msra.mxu0 0
      %352 = vmatpush.bf16.msra.mxu0 0
      %353 = vmatpush.bf16.msra.mxu0 0
      %354 = vmatpush.bf16.msra.mxu0 0
      %355 = vmatpush.bf16.msra.mxu0 0
      %356 = vmatpush.bf16.msra.mxu0 0
      %357 = vmatpush.bf16.msra.mxu0 %v335
      %358 = vmatmul.bf16.gmra.mxu0 %v337
      %v359 = vpop.f32.mrf.mxu0
      %v360 = vadd.f32 %v302, %v359
      %v361 = vpop.f32.mrf.mxu0
      %v362 = vadd.f32 %v304, %v361
      %363 = vmatmul.bf16.gmra.mxu0 %v339
      %v364 = vpop.f32.mrf.mxu0
      %v365 = vadd.f32 %v307, %v364
      %v366 = vpop.f32.mrf.mxu0
      %v367 = vadd.f32 %v309, %v366
      %368 = vmatmul.bf16.gmra.mxu0 %v341
      %v369 = vpop.f32.mrf.mxu0
      %v370 = vadd.f32 %v312, %v369
      %v371 = vpop.f32.mrf.mxu0
      %v372 = vadd.f32 %v314, %v371
      %373 = vmatmul.bf16.gmra.mxu0 %v343
      %v374 = vpop.f32.mrf.mxu0
      %v375 = vadd.f32 %v317, %v374
      %v376 = vpop.f32.mrf.mxu0
      %v377 = vadd.f32 %v319, %v376
      %378 = vmatmul.bf16.gmra.mxu0 %v345
      %v379 = vpop.f32.mrf.mxu0
      %v380 = vadd.f32 %v322, %v379
      %v381 = vpop.f32.mrf.mxu0
      %v382 = vadd.f32 %v324, %v381
      %383 = vmatmul.bf16.gmra.mxu0 %v348
      %v384 = vpop.f32.mrf.mxu0
      %v385 = vadd.f32 %v327, %v384
      %v386 = vpop.f32.mrf.mxu0
      %387 = vdwg.mxu0
      %v388 = vld [vmem:[%s165 + $0x4] sm:$0xf]
      %v389 = vld [vmem:[%s165 + $0x8] sm:$0xf]
      %v390 = vld [vmem:[%s165 + $0xc] sm:$0xf]
      %v391 = vld [vmem:[%s165 + $0x10] sm:$0xf]
      %v392 = vld [vmem:[%s165 + $0x14] sm:$0xf]
      %v393 = vld [vmem:[%s165 + $0x18] sm:$0xf]
      %v394 = vld [vmem:[%s165 + $0x1c] sm:$0xf]
      %v395 = vld [vmem:[%s165 + $0x20] sm:$0xf]
      %v396 = vld [vmem:[%s165 + $0x24] sm:$0xf]
      %v397 = vld [vmem:[%s165 + $0x28] sm:$0xf]
      %v398 = vld [vmem:[%s165 + $0x2c] sm:$0xf]
      %v399 = vld [vmem:[%s165 + $0x30] sm:$0x1]
      %s400 = scalar_lea.vmem %s1, 16
      %v401 = vld [vmem:[%s400] sm:$0xf]
      %v402 = vld [vmem:[%s400 + $0x4] sm:$0xf]
      %v415 = vunpack.c.l.b16 %v388
      %v416 = vunpack.c.l.b16 %v389
      %v417 = vunpack.c.l.b16 %v390
      %v418 = vunpack.c.l.b16 %v391
      %v419 = vunpack.c.l.b16 %v392
      %v420 = vunpack.c.l.b16 %v393
      %v421 = vunpack.c.l.b16 %v394
      %v422 = vunpack.c.l.b16 %v395
      %v423 = vunpack.c.l.b16 %v396
      %v424 = vunpack.c.l.b16 %v397
      %v425 = vunpack.c.l.b16 %v398
      %v426 = vunpack.c.l.b16 %v399
      %v427 = vpack.c.b16 %v416, %v415
      %v428 = vpack.c.b16 %v418, %v417
      %v429 = vpack.c.b16 %v420, %v419
      %v430 = vpack.c.b16 %v422, %v421
      %v431 = vpack.c.b16 %v424, %v423
      %v432 = vpack.c.b16 %v426, %v425
      %v434 = vshrl.u32 %v427, 16
      %v436 = vshll.u32 %v427, 16
      %v438 = vrot.slane %v436, 1
      %v439 = vor.u32 %v434, %v438
      %v441 = vshll.u32 %v428, 16
      %v443 = vrot.slane %v441, 1
      %v444 = vsel %vm219, %v439, %v443
      %v445 = vshrl.u32 %v428, 16
      %v447 = vor.u32 %v445, %v443
      %v449 = vshll.u32 %v429, 16
      %v451 = vrot.slane %v449, 1
      %v452 = vsel %vm219, %v447, %v451
      %v453 = vshrl.u32 %v429, 16
      %v455 = vor.u32 %v453, %v451
      %v457 = vshll.u32 %v430, 16
      %v459 = vrot.slane %v457, 1
      %v460 = vsel %vm219, %v455, %v459
      %v461 = vshrl.u32 %v430, 16
      %v463 = vor.u32 %v461, %v459
      %v465 = vshll.u32 %v431, 16
      %v467 = vrot.slane %v465, 1
      %v468 = vsel %vm219, %v463, %v467
      %v469 = vshrl.u32 %v431, 16
      %v471 = vor.u32 %v469, %v467
      %v473 = vshll.u32 %v432, 16
      %v475 = vrot.slane %v473, 1
      %v476 = vsel %vm219, %v471, %v475
      %v477 = vshrl.u32 %v432, 16
      %v479 = vor.u32 %v477, %v475
      %v482 = vunpack.c.l.b16 %v401
      %v483 = vunpack.c.l.b16 %v402
      %v484 = vpack.c.b16 %v483, %v482
      %v487 = vsel %vm273, %v444, 0
      %v490 = vsel %vm273, %v452, 0
      %v493 = vsel %vm273, %v460, 0
      %v496 = vsel %vm273, %v468, 0
      %v499 = vsel %vm273, %v476, 0
      %v502 = vsel %vm273, %v479, 0
      %504 = vmatpush.bf16.msra.mxu0 0
      %505 = vmatpush.bf16.msra.mxu0 0
      %506 = vmatpush.bf16.msra.mxu0 0
      %507 = vmatpush.bf16.msra.mxu0 0
      %508 = vmatpush.bf16.msra.mxu0 0
      %509 = vmatpush.bf16.msra.mxu0 0
      %510 = vmatpush.bf16.msra.mxu0 0
      %511 = vmatpush.bf16.msra.mxu0 %v484
      %512 = vmatmul.bf16.gmra.mxu0 %v487
      %v513 = vpop.f32.mrf.mxu0
      %v514 = vadd.f32 0.0, %v513
      %v515 = vpop.f32.mrf.mxu0
      %v516 = vadd.f32 0.0, %v515
      %517 = vmatmul.bf16.gmra.mxu0 %v490
      %v518 = vpop.f32.mrf.mxu0
      %v519 = vadd.f32 0.0, %v518
      %v520 = vpop.f32.mrf.mxu0
      %v521 = vadd.f32 0.0, %v520
      %522 = vmatmul.bf16.gmra.mxu0 %v493
      %v523 = vpop.f32.mrf.mxu0
      %v524 = vadd.f32 0.0, %v523
      %v525 = vpop.f32.mrf.mxu0
      %v526 = vadd.f32 0.0, %v525
      %527 = vmatmul.bf16.gmra.mxu0 %v496
      %v528 = vpop.f32.mrf.mxu0
      %v529 = vadd.f32 0.0, %v528
      %v530 = vpop.f32.mrf.mxu0
      %v531 = vadd.f32 0.0, %v530
      %532 = vmatmul.bf16.gmra.mxu0 %v499
      %v533 = vpop.f32.mrf.mxu0
      %v534 = vadd.f32 0.0, %v533
      %v535 = vpop.f32.mrf.mxu0
      %v536 = vadd.f32 0.0, %v535
      %537 = vmatmul.bf16.gmra.mxu0 %v502
      %v538 = vpop.f32.mrf.mxu0
      %v539 = vadd.f32 0.0, %v538
      %v540 = vpop.f32.mrf.mxu0
      %541 = vdwg.mxu0
      %v542 = vadd.f32 %v360, %v514
      %v543 = vadd.f32 %v362, %v516
      %v544 = vadd.f32 %v365, %v519
      %v545 = vadd.f32 %v367, %v521
      %v546 = vadd.f32 %v370, %v524
      %v547 = vadd.f32 %v372, %v526
      %v548 = vadd.f32 %v375, %v529
      %v549 = vadd.f32 %v377, %v531
      %v550 = vadd.f32 %v380, %v534
      %v551 = vadd.f32 %v382, %v536
      %v552 = vadd.f32 %v385, %v539
      %v553 = vld [vmem:[%s165 + $0x4] sm:$0xe]
      %s554 = scalar_lea.vmem %s1, 24
      %v555 = vld [vmem:[%s554] sm:$0xf]
      %v556 = vld [vmem:[%s554 + $0x4] sm:$0xf]
      %v558 = vunpack.c.l.b16 %v553
      %v559 = vpack.c.b16 %v416, %v558
      %vm560 = vcmask 1046528
      %v561 = vrot.slane %v559, 1
      %v562 = vrot.slane %v428, 1
      %v563 = vsel %vm560, %v561, %v562
      %v564 = vrot.slane %v429, 1
      %v565 = vsel %vm560, %v562, %v564
      %v566 = vrot.slane %v430, 1
      %v567 = vsel %vm560, %v564, %v566
      %v568 = vrot.slane %v431, 1
      %v569 = vsel %vm560, %v566, %v568
      %v570 = vrot.slane %v432, 1
      %v571 = vsel %vm560, %v568, %v570
      %v574 = vunpack.c.l.b16 %v555
      %v575 = vunpack.c.l.b16 %v556
      %v576 = vpack.c.b16 %v575, %v574
      %v579 = vsel %vm273, %v563, 0
      %v582 = vsel %vm273, %v565, 0
      %v585 = vsel %vm273, %v567, 0
      %v588 = vsel %vm273, %v569, 0
      %v591 = vsel %vm273, %v571, 0
      %v594 = vsel %vm273, %v570, 0
      %596 = vmatpush.bf16.msra.mxu0 0
      %597 = vmatpush.bf16.msra.mxu0 0
      %598 = vmatpush.bf16.msra.mxu0 0
      %599 = vmatpush.bf16.msra.mxu0 0
      %600 = vmatpush.bf16.msra.mxu0 0
      %601 = vmatpush.bf16.msra.mxu0 0
      %602 = vmatpush.bf16.msra.mxu0 0
      %603 = vmatpush.bf16.msra.mxu0 %v576
      %604 = vmatmul.bf16.gmra.mxu0 %v579
      %v605 = vpop.f32.mrf.mxu0
      %v606 = vadd.f32 0.0, %v605
      %v607 = vpop.f32.mrf.mxu0
      %v608 = vadd.f32 0.0, %v607
      %609 = vmatmul.bf16.gmra.mxu0 %v582
      %v610 = vpop.f32.mrf.mxu0
      %v611 = vadd.f32 0.0, %v610
      %v612 = vpop.f32.mrf.mxu0
      %v613 = vadd.f32 0.0, %v612
      %614 = vmatmul.bf16.gmra.mxu0 %v585
      %v615 = vpop.f32.mrf.mxu0
      %v616 = vadd.f32 0.0, %v615
      %v617 = vpop.f32.mrf.mxu0
      %v618 = vadd.f32 0.0, %v617
      %619 = vmatmul.bf16.gmra.mxu0 %v588
      %v620 = vpop.f32.mrf.mxu0
      %v621 = vadd.f32 0.0, %v620
      %v622 = vpop.f32.mrf.mxu0
      %v623 = vadd.f32 0.0, %v622
      %624 = vmatmul.bf16.gmra.mxu0 %v591
      %v625 = vpop.f32.mrf.mxu0
      %v626 = vadd.f32 0.0, %v625
      %v627 = vpop.f32.mrf.mxu0
      %v628 = vadd.f32 0.0, %v627
      %629 = vmatmul.bf16.gmra.mxu0 %v594
      %v630 = vpop.f32.mrf.mxu0
      %v631 = vadd.f32 0.0, %v630
      %v632 = vpop.f32.mrf.mxu0
      %633 = vdwg.mxu0
      %v634 = vadd.f32 %v542, %v606
      %v635 = vadd.f32 %v543, %v608
      %v636 = vadd.f32 %v544, %v611
      %v637 = vadd.f32 %v545, %v613
      %v638 = vadd.f32 %v546, %v616
      %v639 = vadd.f32 %v547, %v618
      %v640 = vadd.f32 %v548, %v621
      %v641 = vadd.f32 %v549, %v623
      %v642 = vadd.f32 %v550, %v626
      %v643 = vadd.f32 %v551, %v628
      %v644 = vadd.f32 %v552, %v631
      %v645 = vld [vmem:[%s2] sm:$0x1]
      %v647 = vperm.slane %v645, 0
      %v649 = vadd.f32 %v634, %v647
      %v650 = vadd.f32 %v635, %v647
      %v651 = vadd.f32 %v636, %v647
      %v652 = vadd.f32 %v637, %v647
      %v653 = vadd.f32 %v638, %v647
      %v654 = vadd.f32 %v639, %v647
      %v655 = vadd.f32 %v640, %v647
      %v656 = vadd.f32 %v641, %v647
      %v657 = vadd.f32 %v642, %v647
      %v658 = vadd.f32 %v643, %v647
      %v659 = vadd.f32 %v644, %v647
      %vm660 = vcmp.gt.f32.partialorder %v649, 0.0
      %vm661 = vcmp.gt.f32.partialorder %v650, 0.0
      %vm662 = vcmp.gt.f32.partialorder %v651, 0.0
      %vm663 = vcmp.gt.f32.partialorder %v652, 0.0
      %vm664 = vcmp.gt.f32.partialorder %v653, 0.0
      %vm665 = vcmp.gt.f32.partialorder %v654, 0.0
      %vm666 = vcmp.gt.f32.partialorder %v655, 0.0
      %vm667 = vcmp.gt.f32.partialorder %v656, 0.0
      %vm668 = vcmp.gt.f32.partialorder %v657, 0.0
      %vm669 = vcmp.gt.f32.partialorder %v658, 0.0
      %vm670 = vcmp.gt.f32.partialorder %v659, 0.0
      %v671 = vmul.f32 %v649, 0.2
      %v672 = vmul.f32 %v650, 0.2
      %v673 = vmul.f32 %v651, 0.2
      %v674 = vmul.f32 %v652, 0.2
      %v675 = vmul.f32 %v653, 0.2
      %v676 = vmul.f32 %v654, 0.2
      %v677 = vmul.f32 %v655, 0.2
      %v678 = vmul.f32 %v656, 0.2
      %v679 = vmul.f32 %v657, 0.2
      %v680 = vmul.f32 %v658, 0.2
      %v681 = vmul.f32 %v659, 0.2
      %v682 = vsel %vm660, %v649, %v671
      %v683 = vsel %vm661, %v650, %v672
      %v684 = vsel %vm662, %v651, %v673
      %v685 = vsel %vm663, %v652, %v674
      %v686 = vsel %vm664, %v653, %v675
      %v687 = vsel %vm665, %v654, %v676
      %v688 = vsel %vm666, %v655, %v677
      %v689 = vsel %vm667, %v656, %v678
      %v690 = vsel %vm668, %v657, %v679
      %v691 = vsel %vm669, %v658, %v680
      %v692 = vsel %vm670, %v659, %v681
      %v693 = vpack.c.bf16 %v682, %v682
      %v694 = vpack.c.bf16 %v683, %v683
      %v695 = vpack.c.bf16 %v684, %v684
      %v696 = vpack.c.bf16 %v685, %v685
      %v697 = vpack.c.bf16 %v686, %v686
      %v698 = vpack.c.bf16 %v687, %v687
      %v699 = vpack.c.bf16 %v688, %v688
      %v700 = vpack.c.bf16 %v689, %v689
      %v701 = vpack.c.bf16 %v690, %v690
      %v702 = vpack.c.bf16 %v691, %v691
      %v703 = vpack.c.bf16 %v692, %v692
      %vm704 = vcmask 60416
      %705 = vst.msk [vmem:[%s170] sm:$0xf] %vm704, %v693
      %706 = vst.msk [vmem:[%s170 + $0x4] sm:$0xf] %vm704, %v694
      %707 = vst.msk [vmem:[%s170 + $0x8] sm:$0xf] %vm704, %v695
      %708 = vst.msk [vmem:[%s170 + $0xc] sm:$0xf] %vm704, %v696
      %709 = vst.msk [vmem:[%s170 + $0x10] sm:$0xf] %vm704, %v697
      %710 = vst.msk [vmem:[%s170 + $0x14] sm:$0xf] %vm704, %v698
      %711 = vst.msk [vmem:[%s170 + $0x18] sm:$0xf] %vm704, %v699
      %712 = vst.msk [vmem:[%s170 + $0x1c] sm:$0xf] %vm704, %v700
      %713 = vst.msk [vmem:[%s170 + $0x20] sm:$0xf] %vm704, %v701
      %714 = vst.msk [vmem:[%s170 + $0x24] sm:$0xf] %vm704, %v702
      %715 = vst.msk [vmem:[%s170 + $0x28] sm:$0xf] %vm704, %v703
      %p716 = scmp.lt.s32.totalorder %s14, 1
      %s717 = scalar_select %p716, %s14, 1
      %s718 = smul.addr %s717, 11
      %s719 = smul.addr %s718, 4
      %s720 = scalar_lea.vmem %s3, %s719
      // Predicated region
      $region33: #{discriminator_forward.5} parent=31 // pred_check
        %p721 = pneg %p100
      $region34: #{discriminator_forward.5} parent=31 // pred_check_branch
        %723 = sbr.rel (%p721) target = $region36
      $region35: #{discriminator_forward.5} parent=31 // pred_region
        _
      $region36: #{discriminator_forward.5} parent=31 // pred_fallthru
        _
    $region32: #{discriminator_forward.5} parent=5 // pred_fallthru
      _
    %p724 = scmp.le.s32.totalorder 2, %s9
    // Predicated region
    $region37: #{discriminator_forward.5} parent=5 // pred_check
      %p725 = pneg %p724
    $region38: #{discriminator_forward.5} parent=5 // pred_check_branch
      %727 = sbr.rel (%p725) target = $region40
    $region39: #{discriminator_forward.5} parent=5 // pred_region
      %s728 = ssub.s32 %s9, 2
      // Predicated region
      $region41: #{discriminator_forward.5} parent=39 // pred_check
        %p729 = pneg %p106
      $region42: #{discriminator_forward.5} parent=39 // pred_check_branch
        %731 = sbr.rel (%p729) target = $region44
      $region43: #{discriminator_forward.5} parent=39 // pred_region
        %p732 = scmp.lt.s32.totalorder %s15, 1
        %s733 = scalar_select %p732, %s15, 1
        %s734 = smul.addr %s733, 11
        %s735 = smul.addr %s734, 4
        %s736 = scalar_lea.vmem %s3, %s735
      $region44: #{discriminator_forward.5} parent=39 // pred_fallthru
        _
    $region40: #{discriminator_forward.5} parent=5 // pred_fallthru
      _
  $region6: #{discriminator_forward.5} parent=0 // loop_footer
    %s13 = sadd.s32 1, %s9
  $region7: #{discriminator_forward.5} parent=0 // loop_footer_branch
    %8 = sbr.rel target = $region3
  $region8: #{discriminator_forward.5} parent=0 // loop_exit
    _

// kernel: tile.24
$region0: #{tile.24}
  %s0 = inlined_call_operand.vmem [shape: f32[2,16], index: 0, kind: input, shape index: {}]
  %s1 = inlined_call_operand.vmem [shape: f32[1,32], index: 1, kind: output, shape index: {}]
  $region1: #{tile.24} parent=0
    #allocation0 [shape = 'u8[4096]{0}', space=vmem, size = 0x1000, scoped, tag = 'scoped mem for output reshape']
    #allocation1 [shape = 'u8[4096]{0}', space=vmem, size = 0x1000, scoped, tag = 'scoped mem for input reshape']
    %s3 = ssub.s32 4, 1
    %v4 = vld [vmem:[%s0] sm:%s3]
    %5 = vst [vmem:[#allocation1] sm:%s3] %v4
    %v6 = vld [vmem:[#allocation1] sm:$0x1]
    %vm7 = vcmask 130048
    %8 = vst.msk [vmem:[#allocation0] sm:$0x1] %vm7, %v6
    %s9 = scalar_lea.vmem [#allocation1], 1
    %v10 = vld [vmem:[%s9] sm:$0x1]
    %11 = vrot.lane.b32.xlu0 %v10, 16
    %v12 = vpop.permute.xlu0 %11
    %vm13 = vcmask 261248
    %14 = vst.msk [vmem:[#allocation0] sm:$0x1] %vm13, %v12
    %s16 = ssub.s32 2, 1
    %v17 = vld [vmem:[#allocation0] sm:%s16]
    %s19 = ssub.s32 2, 1
    %20 = vst [vmem:[%s1] sm:%s19] %v17

// kernel: tile.28
$region0: #{tile.28}
  #allocation0 [shape = 's32[1]{0}', space=sflag, size = 0x4, scoped, tag = 'scoped memory for tile.28']
  %s0 = inlined_call_operand.vmem [shape: f32[8], index: 0, kind: input, shape index: {}]
  %s1 = inlined_call_operand.vmem [shape: f32[2,8], index: 1, kind: output, shape index: {}]
  // Predicated region
  $region2: #{tile.28} parent=0 // pred_check
    _
  $region3: #{tile.28} parent=0 // pred_check_branch
    %3 = sbr.rel (0) target = $region5
  $region4: #{tile.28} parent=0 // pred_region
    _
  $region5: #{tile.28} parent=0 // pred_fallthru
    _
  %v4 = vld [vmem:[%s0] ss:$0 sm:$0xff]
  %5 = vst [vmem:[%s1] sm:$0x3] %v4

// kernel: tile.29
$region0: #{tile.29}
  %s0 = inlined_call_operand.vmem [shape: f32[2,8], index: 0, kind: input, shape index: {}]
  %s1 = inlined_call_operand.vmem [shape: f32[1,16], index: 1, kind: output, shape index: {}]
  $region1: #{tile.29} parent=0
    #allocation0 [shape = 'u8[4096]{0}', space=vmem, size = 0x1000, scoped, tag = 'scoped mem for output reshape']
    #allocation1 [shape = 'u8[4096]{0}', space=vmem, size = 0x1000, scoped, tag = 'scoped mem for input reshape']
    %s3 = ssub.s32 4, 1
    %v4 = vld [vmem:[%s0] sm:%s3]
    %5 = vst [vmem:[#allocation1] sm:%s3] %v4
    %v6 = vld [vmem:[#allocation1] sm:$0x1]
    %vm7 = vcmask 64512
    %8 = vst.msk [vmem:[#allocation0] sm:$0x1] %vm7, %v6
    %s9 = scalar_lea.vmem [#allocation1], 1
    %v10 = vld [vmem:[%s9] sm:$0x1]
    %11 = vrot.lane.b32.xlu0 %v10, 8
    %v12 = vpop.permute.xlu0 %11
    %vm13 = vcmask 130112
    %14 = vst.msk [vmem:[#allocation0] sm:$0x1] %vm13, %v12
    %s16 = ssub.s32 2, 1
    %v17 = vld [vmem:[#allocation0] sm:%s16]
    %s19 = ssub.s32 2, 1
    %20 = vst [vmem:[%s1] sm:%s19] %v17

// kernel: discriminator_forward.6
$region0: #{discriminator_forward.6}
  #allocation0 [shape = 'u32[]', space=smem, size = 0x4, offset = 0x4, fixed_abs, tag = 'smem constant byte address 0x4 - core index']
  #allocation1 [shape = 'u32[72,128]{1,0:T(1,128)}', space=vmem, size = 0x9000, scoped, tag = 'internal scratch']
  %s0 = inlined_call_operand.vmem [shape: bf16[72,32], index: 0, kind: input, shape index: {}]
  %s1 = inlined_call_operand.vmem [shape: bf16[4,32,16], index: 1, kind: input, shape index: {}]
  %s2 = inlined_call_operand.vmem [shape: f32[1,16], index: 2, kind: input, shape index: {}]
  %s3 = inlined_call_operand.vmem [shape: f32[1,16], index: 3, kind: input, shape index: {}]
  %s4 = inlined_call_operand.vmem [shape: f32[1,64], index: 4, kind: input, shape index: {}]
  %s5 = inlined_call_operand.vmem [shape: bf16[64,16], index: 5, kind: output, shape index: {}]
  %s6 = sld [smem:[#allocation0]]
  $region30: #{discriminator_forward.6} parent=0
    _
  %s8 = ssub.s32 1, %s6
  %s9 = scalar_select 0, %s8, %s6
  // Predicated region
  $region2: #{discriminator_forward.6} parent=0 // pred_check
    _
  $region3: #{discriminator_forward.6} parent=0 // pred_check_branch
    %11 = sbr.rel (0) target = $region5
  $region4: #{discriminator_forward.6} parent=0 // pred_region
    _
  $region5: #{discriminator_forward.6} parent=0 // pred_fallthru
    _
  // Predicated region
  $region6: #{discriminator_forward.6} parent=0 // pred_check
    _
  $region7: #{discriminator_forward.6} parent=0 // pred_check_branch
    %13 = sbr.rel (0) target = $region9
  $region8: #{discriminator_forward.6} parent=0 // pred_region
    _
  $region9: #{discriminator_forward.6} parent=0 // pred_fallthru
    _
  // Predicated region
  $region10: #{discriminator_forward.6} parent=0 // pred_check
    _
  $region11: #{discriminator_forward.6} parent=0 // pred_check_branch
    %15 = sbr.rel (0) target = $region13
  $region12: #{discriminator_forward.6} parent=0 // pred_region
    _
  $region13: #{discriminator_forward.6} parent=0 // pred_fallthru
    _
  // Predicated region
  $region14: #{discriminator_forward.6} parent=0 // pred_check
    _
  $region15: #{discriminator_forward.6} parent=0 // pred_check_branch
    %17 = sbr.rel (0) target = $region17
  $region16: #{discriminator_forward.6} parent=0 // pred_region
    _
  $region17: #{discriminator_forward.6} parent=0 // pred_fallthru
    _
  // Predicated region
  $region18: #{discriminator_forward.6} parent=0 // pred_check
    _
  $region19: #{discriminator_forward.6} parent=0 // pred_check_branch
    %19 = sbr.rel (0) target = $region21
  $region20: #{discriminator_forward.6} parent=0 // pred_region
    _
  $region21: #{discriminator_forward.6} parent=0 // pred_fallthru
    _
  %v21 = vld [vmem:[%s0] sm:$0xf]
  %v22 = vld [vmem:[%s0 + $0x4] sm:$0xf]
  %v23 = vld [vmem:[%s0 + $0x8] sm:$0xf]
  %v24 = vld [vmem:[%s0 + $0xc] sm:$0xf]
  %v25 = vld [vmem:[%s0 + $0x10] sm:$0xf]
  %v26 = vld [vmem:[%s0 + $0x14] sm:$0xf]
  %v27 = vld [vmem:[%s0 + $0x18] sm:$0xf]
  %v28 = vld [vmem:[%s0 + $0x1c] sm:$0xf]
  %v29 = vld [vmem:[%s1] sm:$0xf]
  %v30 = vld [vmem:[%s1 + $0x4] sm:$0xf]
  %v31 = vld [vmem:[%s1 + $0x8] sm:$0xf]
  %v32 = vld [vmem:[%s1 + $0xc] sm:$0xf]
  %v33 = vld [vmem:[%s0 + $0x20] sm:$0x1]
  %s34 = scalar_lea.vmem %s1, 16
  %v35 = vld [vmem:[%s34] sm:$0xf]
  %v36 = vld [vmem:[%s34 + $0x4] sm:$0xf]
  %v37 = vld [vmem:[%s34 + $0x8] sm:$0xf]
  %v38 = vld [vmem:[%s34 + $0xc] sm:$0xf]
  %v48 = vunpack.c.l.b16 %v21
  %v49 = vunpack.c.l.b16 %v22
  %v50 = vunpack.c.l.b16 %v23
  %v51 = vunpack.c.l.b16 %v24
  %v52 = vunpack.c.l.b16 %v25
  %v53 = vunpack.c.l.b16 %v26
  %v54 = vunpack.c.l.b16 %v27
  %v55 = vunpack.c.l.b16 %v28
  %v56 = vunpack.c.l.b16 %v33
  %v57 = vpack.c.b16 %v49, %v48
  %v58 = vpack.c.b16 %v51, %v50
  %v59 = vpack.c.b16 %v53, %v52
  %v60 = vpack.c.b16 %v55, %v54
  %v61 = vpack.c.b16 %v56, %v56
  %vm62 = vsmask.f32 7424
  %v64 = vshrl.u32 %v57, 16
  %v66 = vshll.u32 %v57, 16
  %v68 = vrot.slane %v66, 1
  %v69 = vor.u32 %v64, %v68
  %v71 = vshll.u32 %v58, 16
  %v73 = vrot.slane %v71, 1
  %v74 = vsel %vm62, %v69, %v73
  %v75 = vshrl.u32 %v58, 16
  %v77 = vor.u32 %v75, %v73
  %v79 = vshll.u32 %v59, 16
  %v81 = vrot.slane %v79, 1
  %v82 = vsel %vm62, %v77, %v81
  %v83 = vshrl.u32 %v59, 16
  %v85 = vor.u32 %v83, %v81
  %v87 = vshll.u32 %v60, 16
  %v89 = vrot.slane %v87, 1
  %v90 = vsel %vm62, %v85, %v89
  %v91 = vshrl.u32 %v60, 16
  %v93 = vor.u32 %v91, %v89
  %v95 = vshll.u32 %v61, 16
  %v97 = vrot.slane %v95, 1
  %v98 = vsel %vm62, %v93, %v97
  %v103 = vunpack.c.l.b16 %v35
  %v104 = vunpack.c.l.b16 %v36
  %v105 = vunpack.c.l.b16 %v37
  %v106 = vunpack.c.l.b16 %v38
  %v107 = vpack.c.b16 %v104, %v103
  %v108 = vpack.c.b16 %v106, %v105
  %vm111 = vcmask 261120
  %v113 = vsel %vm111, %v74, 0
  %v116 = vsel %vm111, %v82, 0
  %v119 = vsel %vm111, %v90, 0
  %v122 = vsel %vm111, %v98, 0
  %124 = vmatpush.bf16.msra.mxu0 0
  %125 = vmatpush.bf16.msra.mxu0 0
  %126 = vmatpush.bf16.msra.mxu0 0
  %127 = vmatpush.bf16.msra.mxu0 0
  %128 = vmatpush.bf16.msra.mxu0 0
  %129 = vmatpush.bf16.msra.mxu0 0
  %130 = vmatpush.bf16.msra.mxu0 %v108
  %131 = vmatpush.bf16.msra.mxu0 %v107
  %132 = vmatmul.bf16.gmra.mxu0 %v113
  %v133 = vpop.f32.mrf.mxu0
  %v134 = vadd.f32 0.0, %v133
  %v135 = vpop.f32.mrf.mxu0
  %v136 = vadd.f32 0.0, %v135
  %137 = vmatmul.bf16.gmra.mxu0 %v116
  %v138 = vpop.f32.mrf.mxu0
  %v139 = vadd.f32 0.0, %v138
  %v140 = vpop.f32.mrf.mxu0
  %v141 = vadd.f32 0.0, %v140
  %142 = vmatmul.bf16.gmra.mxu0 %v119
  %v143 = vpop.f32.mrf.mxu0
  %v144 = vadd.f32 0.0, %v143
  %v145 = vpop.f32.mrf.mxu0
  %v146 = vadd.f32 0.0, %v145
  %147 = vmatmul.bf16.gmra.mxu0 %v122
  %v148 = vpop.f32.mrf.mxu0
  %v149 = vadd.f32 0.0, %v148
  %v150 = vpop.f32.mrf.mxu0
  %v151 = vadd.f32 0.0, %v150
  %152 = vdwg.mxu0
  %v157 = vunpack.c.l.b16 %v29
  %v158 = vunpack.c.l.b16 %v30
  %v159 = vunpack.c.l.b16 %v31
  %v160 = vunpack.c.l.b16 %v32
  %v161 = vpack.c.b16 %v158, %v157
  %v162 = vpack.c.b16 %v160, %v159
  %v165 = vsel %vm111, %v57, 0
  %v167 = vsel %vm111, %v58, 0
  %v169 = vsel %vm111, %v59, 0
  %v171 = vsel %vm111, %v60, 0
  %173 = vmatpush.bf16.msra.mxu0 0
  %174 = vmatpush.bf16.msra.mxu0 0
  %175 = vmatpush.bf16.msra.mxu0 0
  %176 = vmatpush.bf16.msra.mxu0 0
  %177 = vmatpush.bf16.msra.mxu0 0
  %178 = vmatpush.bf16.msra.mxu0 0
  %179 = vmatpush.bf16.msra.mxu0 %v162
  %180 = vmatpush.bf16.msra.mxu0 %v161
  %181 = vmatmul.bf16.gmra.mxu0 %v165
  %v182 = vpop.f32.mrf.mxu0
  %v183 = vadd.f32 %v134, %v182
  %v184 = vpop.f32.mrf.mxu0
  %v185 = vadd.f32 %v136, %v184
  %186 = vmatmul.bf16.gmra.mxu0 %v167
  %v187 = vpop.f32.mrf.mxu0
  %v188 = vadd.f32 %v139, %v187
  %v189 = vpop.f32.mrf.mxu0
  %v190 = vadd.f32 %v141, %v189
  %191 = vmatmul.bf16.gmra.mxu0 %v169
  %v192 = vpop.f32.mrf.mxu0
  %v193 = vadd.f32 %v144, %v192
  %v194 = vpop.f32.mrf.mxu0
  %v195 = vadd.f32 %v146, %v194
  %196 = vmatmul.bf16.gmra.mxu0 %v171
  %v197 = vpop.f32.mrf.mxu0
  %v198 = vadd.f32 %v149, %v197
  %v199 = vpop.f32.mrf.mxu0
  %v200 = vadd.f32 %v151, %v199
  %201 = vdwg.mxu0
  %v202 = vld [vmem:[%s0] sm:$0xc]
  %v203 = vld [vmem:[%s0 + $0x20] sm:$0x7]
  %s204 = scalar_lea.vmem %s1, 32
  %v205 = vld [vmem:[%s204] sm:$0xf]
  %v206 = vld [vmem:[%s204 + $0x4] sm:$0xf]
  %v207 = vld [vmem:[%s204 + $0x8] sm:$0xf]
  %v208 = vld [vmem:[%s204 + $0xc] sm:$0xf]
  %v211 = vunpack.c.l.b16 %v202
  %v212 = vunpack.c.l.b16 %v203
  %v213 = vpack.c.b16 %v49, %v211
  %v214 = vpack.c.b16 %v212, %v212
  %vm215 = vsmask.f32 5376
  %v217 = vshrl.u32 %v213, 16
  %v219 = vrot.slane %v217, 2
  %v220 = vshll.u32 %v213, 16
  %v222 = vrot.slane %v220, 3
  %v223 = vor.u32 %v219, %v222
  %v224 = vrot.slane %v75, 2
  %v225 = vrot.slane %v71, 3
  %v226 = vor.u32 %v224, %v225
  %v227 = vsel %vm215, %v223, %v226
  %v228 = vrot.slane %v83, 2
  %v229 = vrot.slane %v79, 3
  %v230 = vor.u32 %v228, %v229
  %v231 = vsel %vm215, %v226, %v230
  %v232 = vrot.slane %v91, 2
  %v233 = vrot.slane %v87, 3
  %v234 = vor.u32 %v232, %v233
  %v235 = vsel %vm215, %v230, %v234
  %v237 = vshrl.u32 %v214, 16
  %v239 = vrot.slane %v237, 2
  %v240 = vshll.u32 %v214, 16
  %v242 = vrot.slane %v240, 3
  %v243 = vor.u32 %v239, %v242
  %v244 = vsel %vm215, %v234, %v243
  %v249 = vunpack.c.l.b16 %v205
  %v250 = vunpack.c.l.b16 %v206
  %v251 = vunpack.c.l.b16 %v207
  %v252 = vunpack.c.l.b16 %v208
  %v253 = vpack.c.b16 %v250, %v249
  %v254 = vpack.c.b16 %v252, %v251
  %v258 = vsel %vm111, %v227, 0
  %v261 = vsel %vm111, %v231, 0
  %v264 = vsel %vm111, %v235, 0
  %v267 = vsel %vm111, %v244, 0
  %269 = vmatpush.bf16.msra.mxu0 0
  %270 = vmatpush.bf16.msra.mxu0 0
  %271 = vmatpush.bf16.msra.mxu0 0
  %272 = vmatpush.bf16.msra.mxu0 0
  %273 = vmatpush.bf16.msra.mxu0 0
  %274 = vmatpush.bf16.msra.mxu0 0
  %275 = vmatpush.bf16.msra.mxu0 %v254
  %276 = vmatpush.bf16.msra.mxu0 %v253
  %277 = vmatmul.bf16.gmra.mxu0 %v258
  %v278 = vpop.f32.mrf.mxu0
  %v279 = vadd.f32 0.0, %v278
  %v280 = vpop.f32.mrf.mxu0
  %v281 = vadd.f32 0.0, %v280
  %282 = vmatmul.bf16.gmra.mxu0 %v261
  %v283 = vpop.f32.mrf.mxu0
  %v284 = vadd.f32 0.0, %v283
  %v285 = vpop.f32.mrf.mxu0
  %v286 = vadd.f32 0.0, %v285
  %287 = vmatmul.bf16.gmra.mxu0 %v264
  %v288 = vpop.f32.mrf.mxu0
  %v289 = vadd.f32 0.0, %v288
  %v290 = vpop.f32.mrf.mxu0
  %v291 = vadd.f32 0.0, %v290
  %292 = vmatmul.bf16.gmra.mxu0 %v267
  %v293 = vpop.f32.mrf.mxu0
  %v294 = vadd.f32 0.0, %v293
  %v295 = vpop.f32.mrf.mxu0
  %v296 = vadd.f32 0.0, %v295
  %297 = vdwg.mxu0
  %v298 = vadd.f32 %v183, %v279
  %v299 = vadd.f32 %v185, %v281
  %v300 = vadd.f32 %v188, %v284
  %v301 = vadd.f32 %v190, %v286
  %v302 = vadd.f32 %v193, %v289
  %v303 = vadd.f32 %v195, %v291
  %v304 = vadd.f32 %v198, %v294
  %v305 = vadd.f32 %v200, %v296
  %v306 = vld [vmem:[%s0] sm:$0x8]
  %s307 = scalar_lea.vmem %s1, 48
  %v308 = vld [vmem:[%s307] sm:$0xf]
  %v309 = vld [vmem:[%s307 + $0x4] sm:$0xf]
  %v310 = vld [vmem:[%s307 + $0x8] sm:$0xf]
  %v311 = vld [vmem:[%s307 + $0xc] sm:$0xf]
  %v313 = vunpack.c.l.b16 %v306
  %v314 = vpack.c.b16 %v49, %v313
  %vm315 = vcmask 1044480
  %v316 = vrot.slane %v314, 3
  %v317 = vrot.slane %v58, 3
  %v318 = vsel %vm315, %v316, %v317
  %v319 = vrot.slane %v59, 3
  %v320 = vsel %vm315, %v317, %v319
  %v321 = vrot.slane %v60, 3
  %v322 = vsel %vm315, %v319, %v321
  %v323 = vrot.slane %v214, 3
  %v324 = vsel %vm315, %v321, %v323
  %v329 = vunpack.c.l.b16 %v308
  %v330 = vunpack.c.l.b16 %v309
  %v331 = vunpack.c.l.b16 %v310
  %v332 = vunpack.c.l.b16 %v311
  %v333 = vpack.c.b16 %v330, %v329
  %v334 = vpack.c.b16 %v332, %v331
  %v338 = vsel %vm111, %v318, 0
  %v341 = vsel %vm111, %v320, 0
  %v344 = vsel %vm111, %v322, 0
  %v347 = vsel %vm111, %v324, 0
  %349 = vmatpush.bf16.msra.mxu0 0
  %350 = vmatpush.bf16.msra.mxu0 0
  %351 = vmatpush.bf16.msra.mxu0 0
  %352 = vmatpush.bf16.msra.mxu0 0
  %353 = vmatpush.bf16.msra.mxu0 0
  %354 = vmatpush.bf16.msra.mxu0 0
  %355 = vmatpush.bf16.msra.mxu0 %v334
  %356 = vmatpush.bf16.msra.mxu0 %v333
  %357 = vmatmul.bf16.gmra.mxu0 %v338
  %v358 = vpop.f32.mrf.mxu0
  %v359 = vadd.f32 0.0, %v358
  %v360 = vpop.f32.mrf.mxu0
  %v361 = vadd.f32 0.0, %v360
  %362 = vmatmul.bf16.gmra.mxu0 %v341
  %v363 = vpop.f32.mrf.mxu0
  %v364 = vadd.f32 0.0, %v363
  %v365 = vpop.f32.mrf.mxu0
  %v366 = vadd.f32 0.0, %v365
  %367 = vmatmul.bf16.gmra.mxu0 %v344
  %v368 = vpop.f32.mrf.mxu0
  %v369 = vadd.f32 0.0, %v368
  %v370 = vpop.f32.mrf.mxu0
  %v371 = vadd.f32 0.0, %v370
  %372 = vmatmul.bf16.gmra.mxu0 %v347
  %v373 = vpop.f32.mrf.mxu0
  %v374 = vadd.f32 0.0, %v373
  %v375 = vpop.f32.mrf.mxu0
  %v376 = vadd.f32 0.0, %v375
  %377 = vdwg.mxu0
  %v378 = vadd.f32 %v298, %v359
  %v379 = vadd.f32 %v299, %v361
  %v380 = vadd.f32 %v300, %v364
  %v381 = vadd.f32 %v301, %v366
  %v382 = vadd.f32 %v302, %v369
  %v383 = vadd.f32 %v303, %v371
  %v384 = vadd.f32 %v304, %v374
  %v385 = vadd.f32 %v305, %v376
  %v386 = vld [vmem:[%s4] sm:$0x1]
  %vm387 = vcmask 523264
  %v389 = vsel %vm387, %v386, 0
  %391 = vmatpush.msra.mxu0 0.0
  %392 = vmatpush.msra.mxu0 0.0
  %393 = vmatpush.msra.mxu0 0.0
  %394 = vmatpush.msra.mxu0 0.0
  %395 = vmatpush.msra.mxu0 0.0
  %396 = vmatpush.msra.mxu0 0.0
  %397 = vmatpush.msra.mxu0 0.0
  %398 = vmatpush.msra.mxu0 0.0
  %399 = vmatpush.msra.mxu0 %v385
  %400 = vmatpush.msra.mxu0 %v384
  %401 = vmatpush.msra.mxu0 %v383
  %402 = vmatpush.msra.mxu0 %v382
  %403 = vmatpush.msra.mxu0 %v381
  %404 = vmatpush.msra.mxu0 %v380
  %405 = vmatpush.msra.mxu0 %v379
  %406 = vmatpush.msra.mxu0 %v378
  %407 = vmatmul.f32.gmra.mxu0 %v389
  %v408 = vpop.f32.mrf.mxu0
  %v409 = vadd.f32 0.0, %v408
  %410 = vdwg.mxu0
  %v411 = vmul.f32 %v378, %v378
  %v412 = vmul.f32 %v379, %v379
  %v413 = vmul.f32 %v380, %v380
  %v414 = vmul.f32 %v381, %v381
  %v415 = vmul.f32 %v382, %v382
  %v416 = vmul.f32 %v383, %v383
  %v417 = vmul.f32 %v384, %v384
  %v418 = vmul.f32 %v385, %v385
  %419 = vmatpush.msra.mxu0 0.0
  %420 = vmatpush.msra.mxu0 0.0
  %421 = vmatpush.msra.mxu0 0.0
  %422 = vmatpush.msra.mxu0 0.0
  %423 = vmatpush.msra.mxu0 0.0
  %424 = vmatpush.msra.mxu0 0.0
  %425 = vmatpush.msra.mxu0 0.0
  %426 = vmatpush.msra.mxu0 0.0
  %427 = vmatpush.msra.mxu0 %v418
  %428 = vmatpush.msra.mxu0 %v417
  %429 = vmatpush.msra.mxu0 %v416
  %430 = vmatpush.msra.mxu0 %v415
  %431 = vmatpush.msra.mxu0 %v414
  %432 = vmatpush.msra.mxu0 %v413
  %433 = vmatpush.msra.mxu0 %v412
  %434 = vmatpush.msra.mxu0 %v411
  %435 = vmatmul.f32.gmra.mxu0 %v389
  %v436 = vpop.f32.mrf.mxu0
  %v437 = vadd.f32 0.0, %v436
  %438 = vdwg.mxu0
  %v439 = vmul.f32 %v409, 0.03125
  %v440 = vmul.f32 %v437, 0.03125
  %v441 = vmul.f32 %v439, %v439
  %v442 = vsub.f32 %v440, %v441
  %v443 = vperm.slane %v439, 0
  %v444 = vsub.f32 %v378, %v443
  %v445 = vsub.f32 %v379, %v443
  %v446 = vsub.f32 %v380, %v443
  %v447 = vsub.f32 %v381, %v443
  %v448 = vsub.f32 %v382, %v443
  %v449 = vsub.f32 %v383, %v443
  %v450 = vsub.f32 %v384, %v443
  %v451 = vsub.f32 %v385, %v443
  %v452 = vadd.f32 %v442, 1e-05
  %v453 = vrsqrt.pop %v452
  %v454 = vmul.f32 %v453, %v452
  %v455 = vmul.f32 %v454, %v453
  %v456 = vmul.f32 0.5, %v455
  %v457 = vsub.f32 1.5, %v456
  %v458 = vmul.f32 %v453, %v457
  %vm459 = vweird.f32 %v452
  %vm460 = vweird.f32 %v453
  %vm461 = vmor %vm459, %vm460
  %v462 = vsel %vm461, %v453, %v458
  %v463 = vperm.slane %v462, 0
  %v464 = vmul.f32 %v444, %v463
  %v465 = vmul.f32 %v445, %v463
  %v466 = vmul.f32 %v446, %v463
  %v467 = vmul.f32 %v447, %v463
  %v468 = vmul.f32 %v448, %v463
  %v469 = vmul.f32 %v449, %v463
  %v470 = vmul.f32 %v450, %v463
  %v471 = vmul.f32 %v451, %v463
  %v472 = vld [vmem:[%s2] sm:$0x1]
  %v474 = vperm.slane %v472, 0
  %v476 = vmul.f32 %v464, %v474
  %v477 = vmul.f32 %v465, %v474
  %v478 = vmul.f32 %v466, %v474
  %v479 = vmul.f32 %v467, %v474
  %v480 = vmul.f32 %v468, %v474
  %v481 = vmul.f32 %v469, %v474
  %v482 = vmul.f32 %v470, %v474
  %v483 = vmul.f32 %v471, %v474
  %v484 = vld [vmem:[%s3] sm:$0x1]
  %v486 = vperm.slane %v484, 0
  %v488 = vadd.f32 %v476, %v486
  %v489 = vadd.f32 %v477, %v486
  %v490 = vadd.f32 %v478, %v486
  %v491 = vadd.f32 %v479, %v486
  %v492 = vadd.f32 %v480, %v486
  %v493 = vadd.f32 %v481, %v486
  %v494 = vadd.f32 %v482, %v486
  %v495 = vadd.f32 %v483, %v486
  %vm496 = vcmp.gt.f32.partialorder %v488, 0.0
  %vm497 = vcmp.gt.f32.partialorder %v489, 0.0
  %vm498 = vcmp.gt.f32.partialorder %v490, 0.0
  %vm499 = vcmp.gt.f32.partialorder %v491, 0.0
  %vm500 = vcmp.gt.f32.partialorder %v492, 0.0
  %vm501 = vcmp.gt.f32.partialorder %v493, 0.0
  %vm502 = vcmp.gt.f32.partialorder %v494, 0.0
  %vm503 = vcmp.gt.f32.partialorder %v495, 0.0
  %v504 = vmul.f32 %v488, 0.2
  %v505 = vmul.f32 %v489, 0.2
  %v506 = vmul.f32 %v490, 0.2
  %v507 = vmul.f32 %v491, 0.2
  %v508 = vmul.f32 %v492, 0.2
  %v509 = vmul.f32 %v493, 0.2
  %v510 = vmul.f32 %v494, 0.2
  %v511 = vmul.f32 %v495, 0.2
  %v512 = vsel %vm496, %v488, %v504
  %v513 = vsel %vm497, %v489, %v505
  %v514 = vsel %vm498, %v490, %v506
  %v515 = vsel %vm499, %v491, %v507
  %v516 = vsel %vm500, %v492, %v508
  %v517 = vsel %vm501, %v493, %v509
  %v518 = vsel %vm502, %v494, %v510
  %v519 = vsel %vm503, %v495, %v511
  %v520 = vpack.c.bf16 %v512, %v512
  %v521 = vpack.c.bf16 %v513, %v513
  %v522 = vpack.c.bf16 %v514, %v514
  %v523 = vpack.c.bf16 %v515, %v515
  %v524 = vpack.c.bf16 %v516, %v516
  %v525 = vpack.c.bf16 %v517, %v517
  %v526 = vpack.c.bf16 %v518, %v518
  %v527 = vpack.c.bf16 %v519, %v519
  %vm528 = vcmask 125952
  %529 = vst.msk [vmem:[%s5] sm:$0xf] %vm528, %v520
  %530 = vst.msk [vmem:[%s5 + $0x4] sm:$0xf] %vm528, %v521
  %531 = vst.msk [vmem:[%s5 + $0x8] sm:$0xf] %vm528, %v522
  %532 = vst.msk [vmem:[%s5 + $0xc] sm:$0xf] %vm528, %v523
  %533 = vst.msk [vmem:[%s5 + $0x10] sm:$0xf] %vm528, %v524
  %534 = vst.msk [vmem:[%s5 + $0x14] sm:$0xf] %vm528, %v525
  %535 = vst.msk [vmem:[%s5 + $0x18] sm:$0xf] %vm528, %v526
  %536 = vst.msk [vmem:[%s5 + $0x1c] sm:$0xf] %vm528, %v527
  // Predicated region
  $region22: #{discriminator_forward.6} parent=0 // pred_check
    _
  $region23: #{discriminator_forward.6} parent=0 // pred_check_branch
    %538 = sbr.rel (0) target = $region25
  $region24: #{discriminator_forward.6} parent=0 // pred_region
    _
  $region25: #{discriminator_forward.6} parent=0 // pred_fallthru
    _
  // Predicated region
  $region26: #{discriminator_forward.6} parent=0 // pred_check
    _
  $region27: #{discriminator_forward.6} parent=0 // pred_check_branch
    %540 = sbr.rel (0) target = $region29
  $region28: #{discriminator_forward.6} parent=0 // pred_region
    _
  $region29: #{discriminator_forward.6} parent=0 // pred_fallthru
    _

// kernel: discriminator_forward.7
$region0: #{discriminator_forward.7}
  #allocation0 [shape = 'u32[]', space=smem, size = 0x4, offset = 0x4, fixed_abs, tag = 'smem constant byte address 0x4 - core index']
  #allocation1 [shape = 'u32[72,128]{1,0:T(1,128)}', space=vmem, size = 0x9000, scoped, tag = 'internal scratch']
  %s0 = inlined_call_operand.vmem [shape: bf16[40,64], index: 0, kind: input, shape index: {}]
  %s1 = inlined_call_operand.vmem [shape: bf16[4,64,32], index: 1, kind: input, shape index: {}]
  %s2 = inlined_call_operand.vmem [shape: f32[1,32], index: 2, kind: input, shape index: {}]
  %s3 = inlined_call_operand.vmem [shape: f32[1,32], index: 3, kind: input, shape index: {}]
  %s4 = inlined_call_operand.vmem [shape: f32[1,32], index: 4, kind: input, shape index: {}]
  %s5 = inlined_call_operand.vmem [shape: bf16[32,32], index: 5, kind: output, shape index: {}]
  %s6 = sld [smem:[#allocation0]]
  $region30: #{discriminator_forward.7} parent=0
    _
  %s8 = ssub.s32 1, %s6
  %s9 = scalar_select 0, %s8, %s6
  // Predicated region
  $region2: #{discriminator_forward.7} parent=0 // pred_check
    _
  $region3: #{discriminator_forward.7} parent=0 // pred_check_branch
    %11 = sbr.rel (0) target = $region5
  $region4: #{discriminator_forward.7} parent=0 // pred_region
    _
  $region5: #{discriminator_forward.7} parent=0 // pred_fallthru
    _
  // Predicated region
  $region6: #{discriminator_forward.7} parent=0 // pred_check
    _
  $region7: #{discriminator_forward.7} parent=0 // pred_check_branch
    %13 = sbr.rel (0) target = $region9
  $region8: #{discriminator_forward.7} parent=0 // pred_region
    _
  $region9: #{discriminator_forward.7} parent=0 // pred_fallthru
    _
  // Predicated region
  $region10: #{discriminator_forward.7} parent=0 // pred_check
    _
  $region11: #{discriminator_forward.7} parent=0 // pred_check_branch
    %15 = sbr.rel (0) target = $region13
  $region12: #{discriminator_forward.7} parent=0 // pred_region
    _
  $region13: #{discriminator_forward.7} parent=0 // pred_fallthru
    _
  // Predicated region
  $region14: #{discriminator_forward.7} parent=0 // pred_check
    _
  $region15: #{discriminator_forward.7} parent=0 // pred_check_branch
    %17 = sbr.rel (0) target = $region17
  $region16: #{discriminator_forward.7} parent=0 // pred_region
    _
  $region17: #{discriminator_forward.7} parent=0 // pred_fallthru
    _
  // Predicated region
  $region18: #{discriminator_forward.7} parent=0 // pred_check
    _
  $region19: #{discriminator_forward.7} parent=0 // pred_check_branch
    %19 = sbr.rel (0) target = $region21
  $region20: #{discriminator_forward.7} parent=0 // pred_region
    _
  $region21: #{discriminator_forward.7} parent=0 // pred_fallthru
    _
  %v21 = vld [vmem:[%s0] sm:$0xf]
  %v22 = vld [vmem:[%s0 + $0x4] sm:$0xf]
  %v23 = vld [vmem:[%s0 + $0x8] sm:$0xf]
  %v24 = vld [vmem:[%s0 + $0xc] sm:$0xf]
  %v25 = vld [vmem:[%s1] sm:$0xf]
  %v26 = vld [vmem:[%s1 + $0x4] sm:$0xf]
  %v27 = vld [vmem:[%s1 + $0x8] sm:$0xf]
  %v28 = vld [vmem:[%s1 + $0xc] sm:$0xf]
  %v29 = vld [vmem:[%s1 + $0x10] sm:$0xf]
  %v30 = vld [vmem:[%s1 + $0x14] sm:$0xf]
  %v31 = vld [vmem:[%s1 + $0x18] sm:$0xf]
  %v32 = vld [vmem:[%s1 + $0x1c] sm:$0xf]
  %v33 = vld [vmem:[%s0 + $0x10] sm:$0x1]
  %s34 = scalar_lea.vmem %s1, 32
  %v35 = vld [vmem:[%s34] sm:$0xf]
  %v36 = vld [vmem:[%s34 + $0x4] sm:$0xf]
  %v37 = vld [vmem:[%s34 + $0x8] sm:$0xf]
  %v38 = vld [vmem:[%s34 + $0xc] sm:$0xf]
  %v39 = vld [vmem:[%s34 + $0x10] sm:$0xf]
  %v40 = vld [vmem:[%s34 + $0x14] sm:$0xf]
  %v41 = vld [vmem:[%s34 + $0x18] sm:$0xf]
  %v42 = vld [vmem:[%s34 + $0x1c] sm:$0xf]
  %v48 = vunpack.c.l.b16 %v21
  %v49 = vunpack.c.l.b16 %v22
  %v50 = vunpack.c.l.b16 %v23
  %v51 = vunpack.c.l.b16 %v24
  %v52 = vunpack.c.l.b16 %v33
  %v53 = vpack.c.b16 %v49, %v48
  %v54 = vpack.c.b16 %v51, %v50
  %v55 = vpack.c.b16 %v52, %v52
  %vm56 = vsmask.f32 7424
  %v58 = vshrl.u32 %v53, 16
  %v60 = vshll.u32 %v53, 16
  %v62 = vrot.slane %v60, 1
  %v63 = vor.u32 %v58, %v62
  %v65 = vshll.u32 %v54, 16
  %v67 = vrot.slane %v65, 1
  %v68 = vsel %vm56, %v63, %v67
  %v69 = vshrl.u32 %v54, 16
  %v71 = vor.u32 %v69, %v67
  %v73 = vshll.u32 %v55, 16
  %v75 = vrot.slane %v73, 1
  %v76 = vsel %vm56, %v71, %v75
  %v85 = vunpack.c.l.b16 %v35
  %v86 = vunpack.c.l.b16 %v36
  %v87 = vunpack.c.l.b16 %v37
  %v88 = vunpack.c.l.b16 %v38
  %v89 = vunpack.c.l.b16 %v39
  %v90 = vunpack.c.l.b16 %v40
  %v91 = vunpack.c.l.b16 %v41
  %v92 = vunpack.c.l.b16 %v42
  %v93 = vpack.c.b16 %v86, %v85
  %v94 = vpack.c.b16 %v88, %v87
  %v95 = vpack.c.b16 %v90, %v89
  %v96 = vpack.c.b16 %v92, %v91
  %vm101 = vcmask 523264
  %v103 = vsel %vm101, %v68, 0
  %v106 = vsel %vm101, %v76, 0
  %108 = vmatpush.bf16.msra.mxu0 0
  %109 = vmatpush.bf16.msra.mxu0 0
  %110 = vmatpush.bf16.msra.mxu0 0
  %111 = vmatpush.bf16.msra.mxu0 0
  %112 = vmatpush.bf16.msra.mxu0 %v96
  %113 = vmatpush.bf16.msra.mxu0 %v95
  %114 = vmatpush.bf16.msra.mxu0 %v94
  %115 = vmatpush.bf16.msra.mxu0 %v93
  %116 = vmatmul.bf16.gmra.mxu0 %v103
  %v117 = vpop.f32.mrf.mxu0
  %v118 = vadd.f32 0.0, %v117
  %v119 = vpop.f32.mrf.mxu0
  %v120 = vadd.f32 0.0, %v119
  %121 = vmatmul.bf16.gmra.mxu0 %v106
  %v122 = vpop.f32.mrf.mxu0
  %v123 = vadd.f32 0.0, %v122
  %v124 = vpop.f32.mrf.mxu0
  %v125 = vadd.f32 0.0, %v124
  %126 = vdwg.mxu0
  %v135 = vunpack.c.l.b16 %v25
  %v136 = vunpack.c.l.b16 %v26
  %v137 = vunpack.c.l.b16 %v27
  %v138 = vunpack.c.l.b16 %v28
  %v139 = vunpack.c.l.b16 %v29
  %v140 = vunpack.c.l.b16 %v30
  %v141 = vunpack.c.l.b16 %v31
  %v142 = vunpack.c.l.b16 %v32
  %v143 = vpack.c.b16 %v136, %v135
  %v144 = vpack.c.b16 %v138, %v137
  %v145 = vpack.c.b16 %v140, %v139
  %v146 = vpack.c.b16 %v142, %v141
  %v151 = vsel %vm101, %v53, 0
  %v153 = vsel %vm101, %v54, 0
  %155 = vmatpush.bf16.msra.mxu0 0
  %156 = vmatpush.bf16.msra.mxu0 0
  %157 = vmatpush.bf16.msra.mxu0 0
  %158 = vmatpush.bf16.msra.mxu0 0
  %159 = vmatpush.bf16.msra.mxu0 %v146
  %160 = vmatpush.bf16.msra.mxu0 %v145
  %161 = vmatpush.bf16.msra.mxu0 %v144
  %162 = vmatpush.bf16.msra.mxu0 %v143
  %163 = vmatmul.bf16.gmra.mxu0 %v151
  %v164 = vpop.f32.mrf.mxu0
  %v165 = vadd.f32 %v118, %v164
  %v166 = vpop.f32.mrf.mxu0
  %v167 = vadd.f32 %v120, %v166
  %168 = vmatmul.bf16.gmra.mxu0 %v153
  %v169 = vpop.f32.mrf.mxu0
  %v170 = vadd.f32 %v123, %v169
  %v171 = vpop.f32.mrf.mxu0
  %v172 = vadd.f32 %v125, %v171
  %173 = vdwg.mxu0
  %v174 = vld [vmem:[%s0] sm:$0xe]
  %v175 = vld [vmem:[%s0 + $0x10] sm:$0x3]
  %s176 = scalar_lea.vmem %s1, 64
  %v177 = vld [vmem:[%s176] sm:$0xf]
  %v178 = vld [vmem:[%s176 + $0x4] sm:$0xf]
  %v179 = vld [vmem:[%s176 + $0x8] sm:$0xf]
  %v180 = vld [vmem:[%s176 + $0xc] sm:$0xf]
  %v181 = vld [vmem:[%s176 + $0x10] sm:$0xf]
  %v182 = vld [vmem:[%s176 + $0x14] sm:$0xf]
  %v183 = vld [vmem:[%s176 + $0x18] sm:$0xf]
  %v184 = vld [vmem:[%s176 + $0x1c] sm:$0xf]
  %v187 = vunpack.c.l.b16 %v174
  %v188 = vunpack.c.l.b16 %v175
  %v189 = vpack.c.b16 %v49, %v187
  %v190 = vpack.c.b16 %v188, %v188
  %vm191 = vsmask.f32 6400
  %v193 = vshrl.u32 %v189, 16
  %v195 = vrot.slane %v193, 1
  %v196 = vshll.u32 %v189, 16
  %v198 = vrot.slane %v196, 2
  %v199 = vor.u32 %v195, %v198
  %v200 = vrot.slane %v69, 1
  %v201 = vrot.slane %v65, 2
  %v202 = vor.u32 %v200, %v201
  %v203 = vsel %vm191, %v199, %v202
  %v205 = vshrl.u32 %v190, 16
  %v207 = vrot.slane %v205, 1
  %v208 = vshll.u32 %v190, 16
  %v210 = vrot.slane %v208, 2
  %v211 = vor.u32 %v207, %v210
  %v212 = vsel %vm191, %v202, %v211
  %v221 = vunpack.c.l.b16 %v177
  %v222 = vunpack.c.l.b16 %v178
  %v223 = vunpack.c.l.b16 %v179
  %v224 = vunpack.c.l.b16 %v180
  %v225 = vunpack.c.l.b16 %v181
  %v226 = vunpack.c.l.b16 %v182
  %v227 = vunpack.c.l.b16 %v183
  %v228 = vunpack.c.l.b16 %v184
  %v229 = vpack.c.b16 %v222, %v221
  %v230 = vpack.c.b16 %v224, %v223
  %v231 = vpack.c.b16 %v226, %v225
  %v232 = vpack.c.b16 %v228, %v227
  %v238 = vsel %vm101, %v203, 0
  %v241 = vsel %vm101, %v212, 0
  %243 = vmatpush.bf16.msra.mxu0 0
  %244 = vmatpush.bf16.msra.mxu0 0
  %245 = vmatpush.bf16.msra.mxu0 0
  %246 = vmatpush.bf16.msra.mxu0 0
  %247 = vmatpush.bf16.msra.mxu0 %v232
  %248 = vmatpush.bf16.msra.mxu0 %v231
  %249 = vmatpush.bf16.msra.mxu0 %v230
  %250 = vmatpush.bf16.msra.mxu0 %v229
  %251 = vmatmul.bf16.gmra.mxu0 %v238
  %v252 = vpop.f32.mrf.mxu0
  %v253 = vadd.f32 0.0, %v252
  %v254 = vpop.f32.mrf.mxu0
  %v255 = vadd.f32 0.0, %v254
  %256 = vmatmul.bf16.gmra.mxu0 %v241
  %v257 = vpop.f32.mrf.mxu0
  %v258 = vadd.f32 0.0, %v257
  %v259 = vpop.f32.mrf.mxu0
  %v260 = vadd.f32 0.0, %v259
  %261 = vdwg.mxu0
  %v262 = vadd.f32 %v165, %v253
  %v263 = vadd.f32 %v167, %v255
  %v264 = vadd.f32 %v170, %v258
  %v265 = vadd.f32 %v172, %v260
  %v266 = vld [vmem:[%s0] sm:$0xc]
  %s267 = scalar_lea.vmem %s1, 96
  %v268 = vld [vmem:[%s267] sm:$0xf]
  %v269 = vld [vmem:[%s267 + $0x4] sm:$0xf]
  %v270 = vld [vmem:[%s267 + $0x8] sm:$0xf]
  %v271 = vld [vmem:[%s267 + $0xc] sm:$0xf]
  %v272 = vld [vmem:[%s267 + $0x10] sm:$0xf]
  %v273 = vld [vmem:[%s267 + $0x14] sm:$0xf]
  %v274 = vld [vmem:[%s267 + $0x18] sm:$0xf]
  %v275 = vld [vmem:[%s267 + $0x1c] sm:$0xf]
  %v277 = vunpack.c.l.b16 %v266
  %v278 = vpack.c.b16 %v49, %v277
  %vm279 = vcmask 1045504
  %v280 = vrot.slane %v278, 2
  %v281 = vrot.slane %v54, 2
  %v282 = vsel %vm279, %v280, %v281
  %v283 = vrot.slane %v190, 2
  %v284 = vsel %vm279, %v281, %v283
  %v293 = vunpack.c.l.b16 %v268
  %v294 = vunpack.c.l.b16 %v269
  %v295 = vunpack.c.l.b16 %v270
  %v296 = vunpack.c.l.b16 %v271
  %v297 = vunpack.c.l.b16 %v272
  %v298 = vunpack.c.l.b16 %v273
  %v299 = vunpack.c.l.b16 %v274
  %v300 = vunpack.c.l.b16 %v275
  %v301 = vpack.c.b16 %v294, %v293
  %v302 = vpack.c.b16 %v296, %v295
  %v303 = vpack.c.b16 %v298, %v297
  %v304 = vpack.c.b16 %v300, %v299
  %v310 = vsel %vm101, %v282, 0
  %v313 = vsel %vm101, %v284, 0
  %315 = vmatpush.bf16.msra.mxu0 0
  %316 = vmatpush.bf16.msra.mxu0 0
  %317 = vmatpush.bf16.msra.mxu0 0
  %318 = vmatpush.bf16.msra.mxu0 0
  %319 = vmatpush.bf16.msra.mxu0 %v304
  %320 = vmatpush.bf16.msra.mxu0 %v303
  %321 = vmatpush.bf16.msra.mxu0 %v302
  %322 = vmatpush.bf16.msra.mxu0 %v301
  %323 = vmatmul.bf16.gmra.mxu0 %v310
  %v324 = vpop.f32.mrf.mxu0
  %v325 = vadd.f32 0.0, %v324
  %v326 = vpop.f32.mrf.mxu0
  %v327 = vadd.f32 0.0, %v326
  %328 = vmatmul.bf16.gmra.mxu0 %v313
  %v329 = vpop.f32.mrf.mxu0
  %v330 = vadd.f32 0.0, %v329
  %v331 = vpop.f32.mrf.mxu0
  %v332 = vadd.f32 0.0, %v331
  %333 = vdwg.mxu0
  %v334 = vadd.f32 %v262, %v325
  %v335 = vadd.f32 %v263, %v327
  %v336 = vadd.f32 %v264, %v330
  %v337 = vadd.f32 %v265, %v332
  %v338 = vld [vmem:[%s4] sm:$0x1]
  %vm339 = vcmask 261120
  %v341 = vsel %vm339, %v338, 0
  %343 = vmatpush.msra.mxu0 0.0
  %344 = vmatpush.msra.mxu0 0.0
  %345 = vmatpush.msra.mxu0 0.0
  %346 = vmatpush.msra.mxu0 0.0
  %347 = vmatpush.msra.mxu0 0.0
  %348 = vmatpush.msra.mxu0 0.0
  %349 = vmatpush.msra.mxu0 0.0
  %350 = vmatpush.msra.mxu0 0.0
  %351 = vmatpush.msra.mxu0 0.0
  %352 = vmatpush.msra.mxu0 0.0
  %353 = vmatpush.msra.mxu0 0.0
  %354 = vmatpush.msra.mxu0 0.0
  %355 = vmatpush.msra.mxu0 %v337
  %356 = vmatpush.msra.mxu0 %v336
  %357 = vmatpush.msra.mxu0 %v335
  %358 = vmatpush.msra.mxu0 %v334
  %359 = vmatmul.f32.gmra.mxu0 %v341
  %v360 = vpop.f32.mrf.mxu0
  %v361 = vadd.f32 0.0, %v360
  %362 = vdwg.mxu0
  %v363 = vmul.f32 %v334, %v334
  %v364 = vmul.f32 %v335, %v335
  %v365 = vmul.f32 %v336, %v336
  %v366 = vmul.f32 %v337, %v337
  %367 = vmatpush.msra.mxu0 0.0
  %368 = vmatpush.msra.mxu0 0.0
  %369 = vmatpush.msra.mxu0 0.0
  %370 = vmatpush.msra.mxu0 0.0
  %371 = vmatpush.msra.mxu0 0.0
  %372 = vmatpush.msra.mxu0 0.0
  %373 = vmatpush.msra.mxu0 0.0
  %374 = vmatpush.msra.mxu0 0.0
  %375 = vmatpush.msra.mxu0 0.0
  %376 = vmatpush.msra.mxu0 0.0
  %377 = vmatpush.msra.mxu0 0.0
  %378 = vmatpush.msra.mxu0 0.0
  %379 = vmatpush.msra.mxu0 %v366
  %380 = vmatpush.msra.mxu0 %v365
  %381 = vmatpush.msra.mxu0 %v364
  %382 = vmatpush.msra.mxu0 %v363
  %383 = vmatmul.f32.gmra.mxu0 %v341
  %v384 = vpop.f32.mrf.mxu0
  %v385 = vadd.f32 0.0, %v384
  %386 = vdwg.mxu0
  %v387 = vmul.f32 %v361, 0.125
  %v388 = vmul.f32 %v385, 0.125
  %v389 = vmul.f32 %v387, %v387
  %v390 = vsub.f32 %v388, %v389
  %v391 = vperm.slane %v387, 0
  %v392 = vsub.f32 %v334, %v391
  %v393 = vsub.f32 %v335, %v391
  %v394 = vsub.f32 %v336, %v391
  %v395 = vsub.f32 %v337, %v391
  %v396 = vadd.f32 %v390, 1e-05
  %v397 = vrsqrt.pop %v396
  %v398 = vmul.f32 %v397, %v396
  %v399 = vmul.f32 %v398, %v397
  %v400 = vmul.f32 0.5, %v399
  %v401 = vsub.f32 1.5, %v400
  %v402 = vmul.f32 %v397, %v401
  %vm403 = vweird.f32 %v396
  %vm404 = vweird.f32 %v397
  %vm405 = vmor %vm403, %vm404
  %v406 = vsel %vm405, %v397, %v402
  %v407 = vperm.slane %v406, 0
  %v408 = vmul.f32 %v392, %v407
  %v409 = vmul.f32 %v393, %v407
  %v410 = vmul.f32 %v394, %v407
  %v411 = vmul.f32 %v395, %v407
  %v412 = vld [vmem:[%s2] sm:$0x1]
  %v414 = vperm.slane %v412, 0
  %v416 = vmul.f32 %v408, %v414
  %v417 = vmul.f32 %v409, %v414
  %v418 = vmul.f32 %v410, %v414
  %v419 = vmul.f32 %v411, %v414
  %v420 = vld [vmem:[%s3] sm:$0x1]
  %v422 = vperm.slane %v420, 0
  %v424 = vadd.f32 %v416, %v422
  %v425 = vadd.f32 %v417, %v422
  %v426 = vadd.f32 %v418, %v422
  %v427 = vadd.f32 %v419, %v422
  %vm428 = vcmp.gt.f32.partialorder %v424, 0.0
  %vm429 = vcmp.gt.f32.partialorder %v425, 0.0
  %vm430 = vcmp.gt.f32.partialorder %v426, 0.0
  %vm431 = vcmp.gt.f32.partialorder %v427, 0.0
  %v432 = vmul.f32 %v424, 0.2
  %v433 = vmul.f32 %v425, 0.2
  %v434 = vmul.f32 %v426, 0.2
  %v435 = vmul.f32 %v427, 0.2
  %v436 = vsel %vm428, %v424, %v432
  %v437 = vsel %vm429, %v425, %v433
  %v438 = vsel %vm430, %v426, %v434
  %v439 = vsel %vm431, %v427, %v435
  %v440 = vpack.c.bf16 %v436, %v436
  %v441 = vpack.c.bf16 %v437, %v437
  %v442 = vpack.c.bf16 %v438, %v438
  %v443 = vpack.c.bf16 %v439, %v439
  %vm444 = vcmask 257024
  %445 = vst.msk [vmem:[%s5] sm:$0xf] %vm444, %v440
  %446 = vst.msk [vmem:[%s5 + $0x4] sm:$0xf] %vm444, %v441
  %447 = vst.msk [vmem:[%s5 + $0x8] sm:$0xf] %vm444, %v442
  %448 = vst.msk [vmem:[%s5 + $0xc] sm:$0xf] %vm444, %v443
  // Predicated region
  $region22: #{discriminator_forward.7} parent=0 // pred_check
    _
  $region23: #{discriminator_forward.7} parent=0 // pred_check_branch
    %450 = sbr.rel (0) target = $region25
  $region24: #{discriminator_forward.7} parent=0 // pred_region
    _
  $region25: #{discriminator_forward.7} parent=0 // pred_fallthru
    _
  // Predicated region
  $region26: #{discriminator_forward.7} parent=0 // pred_check
    _
  $region27: #{discriminator_forward.7} parent=0 // pred_check_branch
    %452 = sbr.rel (0) target = $region29
  $region28: #{discriminator_forward.7} parent=0 // pred_region
    _
  $region29: #{discriminator_forward.7} parent=0 // pred_fallthru
    _

// kernel: discriminator_forward.8
$region0: #{discriminator_forward.8}
  #allocation0 [shape = 'u32[]', space=smem, size = 0x4, offset = 0x4, fixed_abs, tag = 'smem constant byte address 0x4 - core index']
  #allocation1 [shape = 'u32[72,128]{1,0:T(1,128)}', space=vmem, size = 0x9000, scoped, tag = 'internal scratch']
  %s0 = inlined_call_operand.vmem [shape: bf16[24,128], index: 0, kind: input, shape index: {}]
  %s1 = inlined_call_operand.vmem [shape: bf16[4,128,64], index: 1, kind: input, shape index: {}]
  %s2 = inlined_call_operand.vmem [shape: f32[1,64], index: 2, kind: input, shape index: {}]
  %s3 = inlined_call_operand.vmem [shape: f32[1,64], index: 3, kind: input, shape index: {}]
  %s4 = inlined_call_operand.vmem [shape: f32[1,16], index: 4, kind: input, shape index: {}]
  %s5 = inlined_call_operand.vmem [shape: bf16[16,64], index: 5, kind: output, shape index: {}]
  %s6 = sld [smem:[#allocation0]]
  $region30: #{discriminator_forward.8} parent=0
    _
  %s8 = ssub.s32 1, %s6
  %s9 = scalar_select 0, %s8, %s6
  // Predicated region
  $region2: #{discriminator_forward.8} parent=0 // pred_check
    _
  $region3: #{discriminator_forward.8} parent=0 // pred_check_branch
    %11 = sbr.rel (0) target = $region5
  $region4: #{discriminator_forward.8} parent=0 // pred_region
    _
  $region5: #{discriminator_forward.8} parent=0 // pred_fallthru
    _
  // Predicated region
  $region6: #{discriminator_forward.8} parent=0 // pred_check
    _
  $region7: #{discriminator_forward.8} parent=0 // pred_check_branch
    %13 = sbr.rel (0) target = $region9
  $region8: #{discriminator_forward.8} parent=0 // pred_region
    _
  $region9: #{discriminator_forward.8} parent=0 // pred_fallthru
    _
  // Predicated region
  $region10: #{discriminator_forward.8} parent=0 // pred_check
    _
  $region11: #{discriminator_forward.8} parent=0 // pred_check_branch
    %15 = sbr.rel (0) target = $region13
  $region12: #{discriminator_forward.8} parent=0 // pred_region
    _
  $region13: #{discriminator_forward.8} parent=0 // pred_fallthru
    _
  // Predicated region
  $region14: #{discriminator_forward.8} parent=0 // pred_check
    _
  $region15: #{discriminator_forward.8} parent=0 // pred_check_branch
    %17 = sbr.rel (0) target = $region17
  $region16: #{discriminator_forward.8} parent=0 // pred_region
    _
  $region17: #{discriminator_forward.8} parent=0 // pred_fallthru
    _
  // Predicated region
  $region18: #{discriminator_forward.8} parent=0 // pred_check
    _
  $region19: #{discriminator_forward.8} parent=0 // pred_check_branch
    %19 = sbr.rel (0) target = $region21
  $region20: #{discriminator_forward.8} parent=0 // pred_region
    _
  $region21: #{discriminator_forward.8} parent=0 // pred_fallthru
    _
  %v20 = vld [vmem:[%s0] sm:$0xf]
  %v21 = vld [vmem:[%s0 + $0x4] sm:$0xf]
  %v22 = vld [vmem:[%s1] sm:$0xf]
  %v23 = vld [vmem:[%s1 + $0x4] sm:$0xf]
  %v24 = vld [vmem:[%s1 + $0x8] sm:$0xf]
  %v25 = vld [vmem:[%s1 + $0xc] sm:$0xf]
  %v26 = vld [vmem:[%s1 + $0x10] sm:$0xf]
  %v27 = vld [vmem:[%s1 + $0x14] sm:$0xf]
  %v28 = vld [vmem:[%s1 + $0x18] sm:$0xf]
  %v29 = vld [vmem:[%s1 + $0x1c] sm:$0xf]
  %v30 = vld [vmem:[%s1 + $0x20] sm:$0xf]
  %v31 = vld [vmem:[%s1 + $0x24] sm:$0xf]
  %v32 = vld [vmem:[%s1 + $0x28] sm:$0xf]
  %v33 = vld [vmem:[%s1 + $0x2c] sm:$0xf]
  %v34 = vld [vmem:[%s1 + $0x30] sm:$0xf]
  %v35 = vld [vmem:[%s1 + $0x34] sm:$0xf]
  %v36 = vld [vmem:[%s1 + $0x38] sm:$0xf]
  %v37 = vld [vmem:[%s1 + $0x3c] sm:$0xf]
  %v38 = vld [vmem:[%s0] sm:$0xf]
  %v39 = vld [vmem:[%s0 + $0x4] sm:$0xf]
  %v40 = vld [vmem:[%s0 + $0x8] sm:$0x1]
  %s41 = scalar_lea.vmem %s1, 64
  %v42 = vld [vmem:[%s41] sm:$0xf]
  %v43 = vld [vmem:[%s41 + $0x4] sm:$0xf]
  %v44 = vld [vmem:[%s41 + $0x8] sm:$0xf]
  %v45 = vld [vmem:[%s41 + $0xc] sm:$0xf]
  %v46 = vld [vmem:[%s41 + $0x10] sm:$0xf]
  %v47 = vld [vmem:[%s41 + $0x14] sm:$0xf]
  %v48 = vld [vmem:[%s41 + $0x18] sm:$0xf]
  %v49 = vld [vmem:[%s41 + $0x1c] sm:$0xf]
  %v50 = vld [vmem:[%s41 + $0x20] sm:$0xf]
  %v51 = vld [vmem:[%s41 + $0x24] sm:$0xf]
  %v52 = vld [vmem:[%s41 + $0x28] sm:$0xf]
  %v53 = vld [vmem:[%s41 + $0x2c] sm:$0xf]
  %v54 = vld [vmem:[%s41 + $0x30] sm:$0xf]
  %v55 = vld [vmem:[%s41 + $0x34] sm:$0xf]
  %v56 = vld [vmem:[%s41 + $0x38] sm:$0xf]
  %v57 = vld [vmem:[%s41 + $0x3c] sm:$0xf]
  %v61 = vunpack.c.l.b16 %v38
  %v62 = vunpack.c.l.b16 %v39
  %v63 = vunpack.c.l.b16 %v40
  %v64 = vpack.c.b16 %v62, %v61
  %v65 = vpack.c.b16 %v63, %v63
  %vm66 = vsmask.f32 7424
  %v68 = vshrl.u32 %v64, 16
  %v70 = vshll.u32 %v64, 16
  %v72 = vrot.slane %v70, 1
  %v73 = vor.u32 %v68, %v72
  %v75 = vshll.u32 %v65, 16
  %v77 = vrot.slane %v75, 1
  %v78 = vsel %vm66, %v73, %v77
  %v96 = vunpack.c.l.b16 %v42
  %v97 = vunpack.c.l.b16 %v43
  %v98 = vunpack.c.l.b16 %v44
  %v99 = vunpack.c.l.b16 %v45
  %v100 = vunpack.c.l.b16 %v46
  %v101 = vunpack.c.l.b16 %v47
  %v102 = vunpack.c.l.b16 %v48
  %v103 = vunpack.c.l.b16 %v49
  %v104 = vunpack.c.l.b16 %v50
  %v105 = vunpack.c.l.b16 %v51
  %v106 = vunpack.c.l.b16 %v52
  %v107 = vunpack.c.l.b16 %v53
  %v108 = vunpack.c.l.b16 %v54
  %v109 = vunpack.c.l.b16 %v55
  %v110 = vunpack.c.l.b16 %v56
  %v111 = vunpack.c.l.b16 %v57
  %v112 = vpack.c.b16 %v97, %v96
  %v113 = vpack.c.b16 %v99, %v98
  %v114 = vpack.c.b16 %v101, %v100
  %v115 = vpack.c.b16 %v103, %v102
  %v116 = vpack.c.b16 %v105, %v104
  %v117 = vpack.c.b16 %v107, %v106
  %v118 = vpack.c.b16 %v109, %v108
  %v119 = vpack.c.b16 %v111, %v110
  %128 = vmatpush.bf16.msra.mxu0 %v119
  %129 = vmatpush.bf16.msra.mxu0 %v118
  %130 = vmatpush.bf16.msra.mxu0 %v117
  %131 = vmatpush.bf16.msra.mxu0 %v116
  %132 = vmatpush.bf16.msra.mxu0 %v115
  %133 = vmatpush.bf16.msra.mxu0 %v114
  %134 = vmatpush.bf16.msra.mxu0 %v113
  %135 = vmatpush.bf16.msra.mxu0 %v112
  %136 = vmatmul.bf16.gmra.mxu0 %v78
  %v137 = vpop.f32.mrf.mxu0
  %v138 = vadd.f32 0.0, %v137
  %v139 = vpop.f32.mrf.mxu0
  %v140 = vadd.f32 0.0, %v139
  %141 = vdwg.mxu0
  %v144 = vunpack.c.l.b16 %v20
  %v145 = vunpack.c.l.b16 %v21
  %v146 = vpack.c.b16 %v145, %v144
  %v164 = vunpack.c.l.b16 %v22
  %v165 = vunpack.c.l.b16 %v23
  %v166 = vunpack.c.l.b16 %v24
  %v167 = vunpack.c.l.b16 %v25
  %v168 = vunpack.c.l.b16 %v26
  %v169 = vunpack.c.l.b16 %v27
  %v170 = vunpack.c.l.b16 %v28
  %v171 = vunpack.c.l.b16 %v29
  %v172 = vunpack.c.l.b16 %v30
  %v173 = vunpack.c.l.b16 %v31
  %v174 = vunpack.c.l.b16 %v32
  %v175 = vunpack.c.l.b16 %v33
  %v176 = vunpack.c.l.b16 %v34
  %v177 = vunpack.c.l.b16 %v35
  %v178 = vunpack.c.l.b16 %v36
  %v179 = vunpack.c.l.b16 %v37
  %v180 = vpack.c.b16 %v165, %v164
  %v181 = vpack.c.b16 %v167, %v166
  %v182 = vpack.c.b16 %v169, %v168
  %v183 = vpack.c.b16 %v171, %v170
  %v184 = vpack.c.b16 %v173, %v172
  %v185 = vpack.c.b16 %v175, %v174
  %v186 = vpack.c.b16 %v177, %v176
  %v187 = vpack.c.b16 %v179, %v178
  %196 = vmatpush.bf16.msra.mxu0 %v187
  %197 = vmatpush.bf16.msra.mxu0 %v186
  %198 = vmatpush.bf16.msra.mxu0 %v185
  %199 = vmatpush.bf16.msra.mxu0 %v184
  %200 = vmatpush.bf16.msra.mxu0 %v183
  %201 = vmatpush.bf16.msra.mxu0 %v182
  %202 = vmatpush.bf16.msra.mxu0 %v181
  %203 = vmatpush.bf16.msra.mxu0 %v180
  %204 = vmatmul.bf16.gmra.mxu0 %v146
  %v205 = vpop.f32.mrf.mxu0
  %v206 = vadd.f32 %v138, %v205
  %v207 = vpop.f32.mrf.mxu0
  %v208 = vadd.f32 %v140, %v207
  %209 = vdwg.mxu0
  %v210 = vld [vmem:[%s0] sm:$0xe]
  %s211 = scalar_lea.vmem %s1, 128
  %v212 = vld [vmem:[%s211] sm:$0xf]
  %v213 = vld [vmem:[%s211 + $0x4] sm:$0xf]
  %v214 = vld [vmem:[%s211 + $0x8] sm:$0xf]
  %v215 = vld [vmem:[%s211 + $0xc] sm:$0xf]
  %v216 = vld [vmem:[%s211 + $0x10] sm:$0xf]
  %v217 = vld [vmem:[%s211 + $0x14] sm:$0xf]
  %v218 = vld [vmem:[%s211 + $0x18] sm:$0xf]
  %v219 = vld [vmem:[%s211 + $0x1c] sm:$0xf]
  %v220 = vld [vmem:[%s211 + $0x20] sm:$0xf]
  %v221 = vld [vmem:[%s211 + $0x24] sm:$0xf]
  %v222 = vld [vmem:[%s211 + $0x28] sm:$0xf]
  %v223 = vld [vmem:[%s211 + $0x2c] sm:$0xf]
  %v224 = vld [vmem:[%s211 + $0x30] sm:$0xf]
  %v225 = vld [vmem:[%s211 + $0x34] sm:$0xf]
  %v226 = vld [vmem:[%s211 + $0x38] sm:$0xf]
  %v227 = vld [vmem:[%s211 + $0x3c] sm:$0xf]
  %v229 = vunpack.c.l.b16 %v210
  %v230 = vpack.c.b16 %v62, %v229
  %vm231 = vcmask 1046528
  %v232 = vrot.slane %v230, 1
  %v233 = vrot.slane %v65, 1
  %v234 = vsel %vm231, %v232, %v233
  %v252 = vunpack.c.l.b16 %v212
  %v253 = vunpack.c.l.b16 %v213
  %v254 = vunpack.c.l.b16 %v214
  %v255 = vunpack.c.l.b16 %v215
  %v256 = vunpack.c.l.b16 %v216
  %v257 = vunpack.c.l.b16 %v217
  %v258 = vunpack.c.l.b16 %v218
  %v259 = vunpack.c.l.b16 %v219
  %v260 = vunpack.c.l.b16 %v220
  %v261 = vunpack.c.l.b16 %v221
  %v262 = vunpack.c.l.b16 %v222
  %v263 = vunpack.c.l.b16 %v223
  %v264 = vunpack.c.l.b16 %v224
  %v265 = vunpack.c.l.b16 %v225
  %v266 = vunpack.c.l.b16 %v226
  %v267 = vunpack.c.l.b16 %v227
  %v268 = vpack.c.b16 %v253, %v252
  %v269 = vpack.c.b16 %v255, %v254
  %v270 = vpack.c.b16 %v257, %v256
  %v271 = vpack.c.b16 %v259, %v258
  %v272 = vpack.c.b16 %v261, %v260
  %v273 = vpack.c.b16 %v263, %v262
  %v274 = vpack.c.b16 %v265, %v264
  %v275 = vpack.c.b16 %v267, %v266
  %284 = vmatpush.bf16.msra.mxu0 %v275
  %285 = vmatpush.bf16.msra.mxu0 %v274
  %286 = vmatpush.bf16.msra.mxu0 %v273
  %287 = vmatpush.bf16.msra.mxu0 %v272
  %288 = vmatpush.bf16.msra.mxu0 %v271
  %289 = vmatpush.bf16.msra.mxu0 %v270
  %290 = vmatpush.bf16.msra.mxu0 %v269
  %291 = vmatpush.bf16.msra.mxu0 %v268
  %292 = vmatmul.bf16.gmra.mxu0 %v234
  %v293 = vpop.f32.mrf.mxu0
  %v294 = vadd.f32 0.0, %v293
  %v295 = vpop.f32.mrf.mxu0
  %v296 = vadd.f32 0.0, %v295
  %297 = vdwg.mxu0
  %v298 = vadd.f32 %v206, %v294
  %v299 = vadd.f32 %v208, %v296
  %v300 = vld [vmem:[%s0 + $0x8] sm:$0x3]
  %s301 = scalar_lea.vmem %s1, 192
  %v302 = vld [vmem:[%s301] sm:$0xf]
  %v303 = vld [vmem:[%s301 + $0x4] sm:$0xf]
  %v304 = vld [vmem:[%s301 + $0x8] sm:$0xf]
  %v305 = vld [vmem:[%s301 + $0xc] sm:$0xf]
  %v306 = vld [vmem:[%s301 + $0x10] sm:$0xf]
  %v307 = vld [vmem:[%s301 + $0x14] sm:$0xf]
  %v308 = vld [vmem:[%s301 + $0x18] sm:$0xf]
  %v309 = vld [vmem:[%s301 + $0x1c] sm:$0xf]
  %v310 = vld [vmem:[%s301 + $0x20] sm:$0xf]
  %v311 = vld [vmem:[%s301 + $0x24] sm:$0xf]
  %v312 = vld [vmem:[%s301 + $0x28] sm:$0xf]
  %v313 = vld [vmem:[%s301 + $0x2c] sm:$0xf]
  %v314 = vld [vmem:[%s301 + $0x30] sm:$0xf]
  %v315 = vld [vmem:[%s301 + $0x34] sm:$0xf]
  %v316 = vld [vmem:[%s301 + $0x38] sm:$0xf]
  %v317 = vld [vmem:[%s301 + $0x3c] sm:$0xf]
  %v319 = vunpack.c.l.b16 %v300
  %v320 = vpack.c.b16 %v319, %v319
  %vm321 = vsmask.f32 6400
  %v323 = vshrl.u32 %v230, 16
  %v325 = vrot.slane %v323, 1
  %v326 = vshll.u32 %v230, 16
  %v328 = vrot.slane %v326, 2
  %v329 = vor.u32 %v325, %v328
  %v331 = vshrl.u32 %v320, 16
  %v333 = vrot.slane %v331, 1
  %v334 = vshll.u32 %v320, 16
  %v336 = vrot.slane %v334, 2
  %v337 = vor.u32 %v333, %v336
  %v338 = vsel %vm321, %v329, %v337
  %v356 = vunpack.c.l.b16 %v302
  %v357 = vunpack.c.l.b16 %v303
  %v358 = vunpack.c.l.b16 %v304
  %v359 = vunpack.c.l.b16 %v305
  %v360 = vunpack.c.l.b16 %v306
  %v361 = vunpack.c.l.b16 %v307
  %v362 = vunpack.c.l.b16 %v308
  %v363 = vunpack.c.l.b16 %v309
  %v364 = vunpack.c.l.b16 %v310
  %v365 = vunpack.c.l.b16 %v311
  %v366 = vunpack.c.l.b16 %v312
  %v367 = vunpack.c.l.b16 %v313
  %v368 = vunpack.c.l.b16 %v314
  %v369 = vunpack.c.l.b16 %v315
  %v370 = vunpack.c.l.b16 %v316
  %v371 = vunpack.c.l.b16 %v317
  %v372 = vpack.c.b16 %v357, %v356
  %v373 = vpack.c.b16 %v359, %v358
  %v374 = vpack.c.b16 %v361, %v360
  %v375 = vpack.c.b16 %v363, %v362
  %v376 = vpack.c.b16 %v365, %v364
  %v377 = vpack.c.b16 %v367, %v366
  %v378 = vpack.c.b16 %v369, %v368
  %v379 = vpack.c.b16 %v371, %v370
  %388 = vmatpush.bf16.msra.mxu0 %v379
  %389 = vmatpush.bf16.msra.mxu0 %v378
  %390 = vmatpush.bf16.msra.mxu0 %v377
  %391 = vmatpush.bf16.msra.mxu0 %v376
  %392 = vmatpush.bf16.msra.mxu0 %v375
  %393 = vmatpush.bf16.msra.mxu0 %v374
  %394 = vmatpush.bf16.msra.mxu0 %v373
  %395 = vmatpush.bf16.msra.mxu0 %v372
  %396 = vmatmul.bf16.gmra.mxu0 %v338
  %v397 = vpop.f32.mrf.mxu0
  %v398 = vadd.f32 0.0, %v397
  %v399 = vpop.f32.mrf.mxu0
  %v400 = vadd.f32 0.0, %v399
  %401 = vdwg.mxu0
  %v402 = vadd.f32 %v298, %v398
  %v403 = vadd.f32 %v299, %v400
  %v404 = vld [vmem:[%s4] sm:$0x1]
  %vm405 = vcmask 130048
  %v407 = vsel %vm405, %v404, 0
  %409 = vmatpush.msra.mxu0 0.0
  %410 = vmatpush.msra.mxu0 0.0
  %411 = vmatpush.msra.mxu0 0.0
  %412 = vmatpush.msra.mxu0 0.0
  %413 = vmatpush.msra.mxu0 0.0
  %414 = vmatpush.msra.mxu0 0.0
  %415 = vmatpush.msra.mxu0 0.0
  %416 = vmatpush.msra.mxu0 0.0
  %417 = vmatpush.msra.mxu0 0.0
  %418 = vmatpush.msra.mxu0 0.0
  %419 = vmatpush.msra.mxu0 0.0
  %420 = vmatpush.msra.mxu0 0.0
  %421 = vmatpush.msra.mxu0 0.0
  %422 = vmatpush.msra.mxu0 0.0
  %423 = vmatpush.msra.mxu0 %v403
  %424 = vmatpush.msra.mxu0 %v402
  %425 = vmatmul.f32.gmra.mxu0 %v407
  %v426 = vpop.f32.mrf.mxu0
  %v427 = vadd.f32 0.0, %v426
  %428 = vdwg.mxu0
  %v429 = vmul.f32 %v402, %v402
  %v430 = vmul.f32 %v403, %v403
  %431 = vmatpush.msra.mxu0 0.0
  %432 = vmatpush.msra.mxu0 0.0
  %433 = vmatpush.msra.mxu0 0.0
  %434 = vmatpush.msra.mxu0 0.0
  %435 = vmatpush.msra.mxu0 0.0
  %436 = vmatpush.msra.mxu0 0.0
  %437 = vmatpush.msra.mxu0 0.0
  %438 = vmatpush.msra.mxu0 0.0
  %439 = vmatpush.msra.mxu0 0.0
  %440 = vmatpush.msra.mxu0 0.0
  %441 = vmatpush.msra.mxu0 0.0
  %442 = vmatpush.msra.mxu0 0.0
  %443 = vmatpush.msra.mxu0 0.0
  %444 = vmatpush.msra.mxu0 0.0
  %445 = vmatpush.msra.mxu0 %v430
  %446 = vmatpush.msra.mxu0 %v429
  %447 = vmatmul.f32.gmra.mxu0 %v407
  %v448 = vpop.f32.mrf.mxu0
  %v449 = vadd.f32 0.0, %v448
  %450 = vdwg.mxu0
  %v451 = vmul.f32 %v427, 0.5
  %v452 = vmul.f32 %v449, 0.5
  %v453 = vmul.f32 %v451, %v451
  %v454 = vsub.f32 %v452, %v453
  %v455 = vperm.slane %v451, 0
  %v456 = vsub.f32 %v402, %v455
  %v457 = vsub.f32 %v403, %v455
  %v458 = vadd.f32 %v454, 1e-05
  %v459 = vrsqrt.pop %v458
  %v460 = vmul.f32 %v459, %v458
  %v461 = vmul.f32 %v460, %v459
  %v462 = vmul.f32 0.5, %v461
  %v463 = vsub.f32 1.5, %v462
  %v464 = vmul.f32 %v459, %v463
  %vm465 = vweird.f32 %v458
  %vm466 = vweird.f32 %v459
  %vm467 = vmor %vm465, %vm466
  %v468 = vsel %vm467, %v459, %v464
  %v469 = vperm.slane %v468, 0
  %v470 = vmul.f32 %v456, %v469
  %v471 = vmul.f32 %v457, %v469
  %v472 = vld [vmem:[%s2] sm:$0x1]
  %v474 = vperm.slane %v472, 0
  %v476 = vmul.f32 %v470, %v474
  %v477 = vmul.f32 %v471, %v474
  %v478 = vld [vmem:[%s3] sm:$0x1]
  %v480 = vperm.slane %v478, 0
  %v482 = vadd.f32 %v476, %v480
  %v483 = vadd.f32 %v477, %v480
  %vm484 = vcmp.gt.f32.partialorder %v482, 0.0
  %vm485 = vcmp.gt.f32.partialorder %v483, 0.0
  %v486 = vmul.f32 %v482, 0.2
  %v487 = vmul.f32 %v483, 0.2
  %v488 = vsel %vm484, %v482, %v486
  %v489 = vsel %vm485, %v483, %v487
  %v490 = vpack.c.bf16 %v488, %v488
  %v491 = vpack.c.bf16 %v489, %v489
  %vm492 = vcmask 519168
  %493 = vst.msk [vmem:[%s5] sm:$0xf] %vm492, %v490
  %494 = vst.msk [vmem:[%s5 + $0x4] sm:$0xf] %vm492, %v491
  // Predicated region
  $region22: #{discriminator_forward.8} parent=0 // pred_check
    _
  $region23: #{discriminator_forward.8} parent=0 // pred_check_branch
    %496 = sbr.rel (0) target = $region25
  $region24: #{discriminator_forward.8} parent=0 // pred_region
    _
  $region25: #{discriminator_forward.8} parent=0 // pred_fallthru
    _
  // Predicated region
  $region26: #{discriminator_forward.8} parent=0 // pred_check
    _
  $region27: #{discriminator_forward.8} parent=0 // pred_check_branch
    %498 = sbr.rel (0) target = $region29
  $region28: #{discriminator_forward.8} parent=0 // pred_region
    _
  $region29: #{discriminator_forward.8} parent=0 // pred_fallthru
    _

// kernel: discriminator_forward.9
$region0: #{discriminator_forward.9}
  #allocation0 [shape = 'u32[]', space=smem, size = 0x4, offset = 0x4, fixed_abs, tag = 'smem constant byte address 0x4 - core index']
  #allocation1 [shape = 'u32[72,128]{1,0:T(1,128)}', space=vmem, size = 0x9000, scoped, tag = 'internal scratch']
  %s0 = inlined_call_operand.vmem [shape: bf16[2,64], index: 0, kind: input, shape index: {}]
  %s1 = inlined_call_operand.vmem [shape: bf16[64,128], index: 1, kind: input, shape index: {}]
  %s2 = inlined_call_operand.vmem [shape: f32[1,128], index: 2, kind: input, shape index: {}]
  %s3 = inlined_call_operand.vmem [shape: f32[2,128], index: 3, kind: output, shape index: {}]
  %s4 = sld [smem:[#allocation0]]
  $region22: #{discriminator_forward.9} parent=0
    _
  %s6 = ssub.s32 1, %s4
  %s7 = scalar_select 0, %s6, %s4
  // Predicated region
  $region2: #{discriminator_forward.9} parent=0 // pred_check
    _
  $region3: #{discriminator_forward.9} parent=0 // pred_check_branch
    %9 = sbr.rel (0) target = $region5
  $region4: #{discriminator_forward.9} parent=0 // pred_region
    _
  $region5: #{discriminator_forward.9} parent=0 // pred_fallthru
    _
  // Predicated region
  $region6: #{discriminator_forward.9} parent=0 // pred_check
    _
  $region7: #{discriminator_forward.9} parent=0 // pred_check_branch
    %11 = sbr.rel (0) target = $region9
  $region8: #{discriminator_forward.9} parent=0 // pred_region
    _
  $region9: #{discriminator_forward.9} parent=0 // pred_fallthru
    _
  // Predicated region
  $region10: #{discriminator_forward.9} parent=0 // pred_check
    _
  $region11: #{discriminator_forward.9} parent=0 // pred_check_branch
    %13 = sbr.rel (0) target = $region13
  $region12: #{discriminator_forward.9} parent=0 // pred_region
    _
  $region13: #{discriminator_forward.9} parent=0 // pred_fallthru
    _
  %v15 = vld [vmem:[%s0] sm:$0x1]
  %v16 = vld [vmem:[%s1] sm:$0xf]
  %v17 = vld [vmem:[%s1 + $0x4] sm:$0xf]
  %v18 = vld [vmem:[%s1 + $0x8] sm:$0xf]
  %v19 = vld [vmem:[%s1 + $0xc] sm:$0xf]
  %v20 = vld [vmem:[%s1 + $0x10] sm:$0xf]
  %v21 = vld [vmem:[%s1 + $0x14] sm:$0xf]
  %v22 = vld [vmem:[%s1 + $0x18] sm:$0xf]
  %v23 = vld [vmem:[%s1 + $0x1c] sm:$0xf]
  %v24 = vld [vmem:[%s2] sm:$0x1]
  %v26 = vperm.slane %v24, 0
  %v36 = vunpack.c.l.b16 %v16
  %v37 = vunpack.c.l.b16 %v17
  %v38 = vunpack.c.l.b16 %v18
  %v39 = vunpack.c.l.b16 %v19
  %v40 = vunpack.c.l.b16 %v20
  %v41 = vunpack.c.l.b16 %v21
  %v42 = vunpack.c.l.b16 %v22
  %v43 = vunpack.c.l.b16 %v23
  %v44 = vpack.c.b16 %v37, %v36
  %v45 = vpack.c.b16 %v39, %v38
  %v46 = vpack.c.b16 %v41, %v40
  %v47 = vpack.c.b16 %v43, %v42
  %vm52 = vcmask 523264
  %v54 = vsel %vm52, %v15, 0
  %56 = vmatpush.bf16.msra.mxu0 0
  %57 = vmatpush.bf16.msra.mxu0 0
  %58 = vmatpush.bf16.msra.mxu0 0
  %59 = vmatpush.bf16.msra.mxu0 0
  %60 = vmatpush.bf16.msra.mxu0 %v47
  %61 = vmatpush.bf16.msra.mxu0 %v46
  %62 = vmatpush.bf16.msra.mxu0 %v45
  %63 = vmatpush.bf16.msra.mxu0 %v44
  %64 = vmatmul.bf16.gmra.mxu0 %v54
  %v65 = vpop.f32.mrf.mxu0
  %v66 = vadd.f32 %v26, %v65
  %v67 = vpop.f32.mrf.mxu0
  %68 = vdwg.mxu0
  %v69 = vlaneseq
  %v70 = vand.u32 %v69, 127
  %vm71 = vcmp.ge.s32.totalorder %v70, 1
  %vm72 = vcmp.lt.s32.totalorder %v70, 11
  %vm73 = vmand %vm71, %vm72
  %v74 = vsel %vm73, %v66, -1e+30
  %vm75 = vcmask 1041408
  %v76 = vsel %vm75, %v74, -inf
  %77 = vmax.xlane.f32.xlu0 %v76
  %v78 = vpop.xlane.xlu0 %77
  %v79 = vsub.f32 %v66, %v78
  %v80 = vmul.f32 %v79, 1.442695
  %v81 = vpow.pop %v80
  %v82 = vsel %vm73, %v81, 0.0
  %v83 = vsel %vm75, %v82, 0.0
  %84 = vadd.xlane.f32.xlu0 %v83
  %v85 = vpop.xlane.xlu0 %84
  %v86 = vrcp.pop %v85
  %v87 = vmul.f32 %v85, %v86
  %v88 = vsub.f32 2.0, %v87
  %v89 = vmul.f32 %v86, %v88
  %vm90 = vcmp.eq.s32.totalorder %v70, 0
  %v91 = vmul.f32 %v82, %v89
  %v92 = vsel %vm90, %v66, %v91
  %93 = vst [vmem:[%s3] sm:$0x3] %v92
  // Predicated region
  $region14: #{discriminator_forward.9} parent=0 // pred_check
    _
  $region15: #{discriminator_forward.9} parent=0 // pred_check_branch
    %95 = sbr.rel (0) target = $region17
  $region16: #{discriminator_forward.9} parent=0 // pred_region
    _
  $region17: #{discriminator_forward.9} parent=0 // pred_fallthru
    _
  // Predicated region
  $region18: #{discriminator_forward.9} parent=0 // pred_check
    _
  $region19: #{discriminator_forward.9} parent=0 // pred_check_branch
    %97 = sbr.rel (0) target = $region21
  $region20: #{discriminator_forward.9} parent=0 // pred_region
    _
  $region21: #{discriminator_forward.9} parent=0 // pred_fallthru
    _

</llo_original>
